<compile_context>
chip_gen: v6e
topology: v6e:2x2x1
jax: 0.10.0
libtpu: 0.0.40
codegen_flags: <defaults>
</compile_context>

<pallas_src>
import functools

import jax
import jax.numpy as jnp
import numpy as np
from jax.experimental import pallas as pl
from jax.experimental.pallas import tpu as pltpu


def _ca_block_kernel(x_ref, w1_ref, whw_ref, bias_ref,
                     pool_ref, rh_ref, rw_ref, o_ref, *, block_b, C):
    bb = block_b
    Cr = w1_ref.shape[0]
    N = pool_ref.shape[1]          # H + W

    # Whole block, lane-dense rows = (image, channel) pairs.
    xflat = x_ref[...].astype(jnp.float32)                            # (bb*C, L)

    # Fused coordinate pooling on the MXU, one matmul for the whole block:
    # columns [0:H] = mean over W, columns [H:H+W] = mean over H
    # (matches torch.cat((x_h, x_w), 3); 1/W and 1/H live in `pool`).
    xp = jnp.dot(xflat, pool_ref[...],
                 preferred_element_type=jnp.float32)                  # (bb*C, N)
    xp3 = xp.reshape(bb, C, N)     # leading-dim split only (C % 8 == 0)

    # Shared 1x1 conv (BN scale already folded) + BN bias + ReLU,
    # batched over the images of this block with a single einsum.
    w1b = jnp.broadcast_to(w1_ref[...], (bb, Cr, C))
    y = jnp.maximum(
        jnp.einsum('brc,bcn->brn', w1b, xp3,
                   preferred_element_type=jnp.float32) + bias_ref[...],
        0.0)                                                          # (bb, Cr, N)

    # Fused F_h / F_w 1x1 convs + single sigmoid.  Rows [:C] -> h-gate,
    # rows [C:] -> w-gate; the expansion matrices pick the valid halves.
    whwb = jnp.broadcast_to(whw_ref[...], (bb, 2 * C, Cr))
    s = jax.nn.sigmoid(
        jnp.einsum('bcr,brn->bcn', whwb, y,
                   preferred_element_type=jnp.float32))               # (bb, 2C, N)

    s_h = s[:, :C, :].reshape(bb * C, N)
    s_w = s[:, C:, :].reshape(bb * C, N)

    # Lane-dense gate expansion (one matmul pair for the whole block):
    # g[bc, h*W + w] = s_h[bc, h] * s_w[bc, w].
    g = (jnp.dot(s_h, rh_ref[...], preferred_element_type=jnp.float32)
         * jnp.dot(s_w, rw_ref[...], preferred_element_type=jnp.float32))  # (bb*C, L)

    o_ref[...] = (xflat * g).astype(o_ref.dtype)


def _pick_block_b(batch, c, l, itemsize=4, target_bytes=8 << 20, max_bb=32):
    """Images per grid step: ~8 MiB of (in+out) per step, grid >= 2 if B >= 2."""
    per_img = 2 * c * l * itemsize                 # input + output tile bytes
    bb = max(1, min(max_bb, target_bytes // per_img))
    if batch >= 2:
        bb = max(1, min(bb, batch // 2))           # feed both v7x TensorCores
    while batch % bb:                              # must divide the batch
        bb -= 1
    return int(bb)


def ca_block(x, w1, wh, ww, gamma, beta, run_mean, run_var, eps=1e-5,
             block_b=None, io_dtype=None):
    """x: (B, C, H, W).  w1: (Cr, C), wh/ww: (C, Cr).  BN in eval mode.

    io_dtype: dtype for the x / output HBM traffic (e.g. jnp.bfloat16 on
    v6e/v7x).  Compute and accumulation stay float32.
    """
    B, C, H, W = x.shape
    Cr = w1.shape[0]
    L = H * W
    N = H + W
    io_dtype = jnp.dtype(x.dtype) if io_dtype is None else jnp.dtype(io_dtype)

    # Fold eval-mode BatchNorm:  scale*(w1 @ x) + bias == (scale*w1) @ x + bias
    inv_std = 1.0 / jnp.sqrt(run_var.astype(jnp.float32) + eps)
    scale = gamma.astype(jnp.float32) * inv_std                       # (Cr,)
    w1f = scale[:, None] * w1.astype(jnp.float32)                     # (Cr, C)
    bias_n = jnp.broadcast_to(
        (beta.astype(jnp.float32)
         - run_mean.astype(jnp.float32) * scale)[:, None], (Cr, N))   # (Cr, N)
    whw = jnp.concatenate([wh.astype(jnp.float32),
                           ww.astype(jnp.float32)], axis=0)           # (2C, Cr)

    # Constant pooling / expansion matrices (built once at trace time).
    idx = np.arange(L)
    hs = idx // W
    ws = idx % W
    pool = np.zeros((L, N), np.float32)
    pool[idx, hs] = 1.0 / W            # mean over W  -> columns [0:H]
    pool[idx, H + ws] = 1.0 / H        # mean over H  -> columns [H:H+W]
    rh = np.zeros((N, L), np.float32)
    rh[hs, idx] = 1.0                  # broadcast s_h[:, h] over w
    rw = np.zeros((N, L), np.float32)
    rw[H + ws, idx] = 1.0              # broadcast s_w[:, w] over h
    pool = jnp.asarray(pool)
    rh = jnp.asarray(rh)
    rw = jnp.asarray(rw)

    itemsize = io_dtype.itemsize
    if block_b is None:
        block_b = _pick_block_b(B, C, L, itemsize=itemsize)
    assert B % block_b == 0

    # Lane-dense layout: rows are (image, channel), columns are H*W.
    x2d = x.astype(io_dtype).reshape(B * C, L)

    # VMEM budget: double-buffered x/out tiles + constants + headroom.
    tile_bytes = block_b * C * L * itemsize
    const_bytes = 4 * (Cr * C + 2 * C * Cr + Cr * N + L * N + 2 * N * L)
    vmem_limit = int(4 * tile_bytes + 2 * const_bytes + (4 << 20))
    vmem_limit = min(max(vmem_limit, 16 << 20), 48 << 20)

    kernel = functools.partial(_ca_block_kernel, block_b=block_b, C=C)

    def _make_call(const_mode):
        def cspec(shape):
            if const_mode is None:
                return pl.BlockSpec(shape, lambda b: (0, 0))
            return pl.BlockSpec(shape, lambda b: (0, 0),
                                pipeline_mode=const_mode)

        return pl.pallas_call(
            kernel,
            out_shape=jax.ShapeDtypeStruct((B * C, L), io_dtype),
            grid_spec=pltpu.PrefetchScalarGridSpec(
                num_scalar_prefetch=0,
                grid=(B // block_b,),
                in_specs=[
                    pl.BlockSpec((block_b * C, L), lambda b: (b, 0)),
                    cspec((Cr, C)),        # folded conv_1x1 weight
                    cspec((2 * C, Cr)),    # fused F_h / F_w weight
                    cspec((Cr, N)),        # folded BN bias (pre-broadcast)
                    cspec((L, N)),         # pooling matrix
                    cspec((N, L)),         # h-gate expansion
                    cspec((N, L)),         # w-gate expansion
                ],
                out_specs=pl.BlockSpec((block_b * C, L), lambda b: (b, 0)),
            ),
            compiler_params=pltpu.CompilerParams(
                dimension_semantics=("parallel",),
                vmem_limit_bytes=vmem_limit),
        )

    args = (x2d, w1f, whw, bias_n, pool, rh, rw)
    try:
        # Constants have a constant index_map -> single-buffer them.
        out2d = _make_call(pl.Buffered(1))(*args)
    except Exception:
        # Fallback if this Pallas build rejects single-buffered operands.
        out2d = _make_call(None)(*args)

    return out2d.reshape(B, C, H, W)


def _reference(x, w1, wh, ww, gamma, beta, run_mean, run_var, eps=1e-5):
    # Pure-JAX reference mirroring the PyTorch forward (BN in eval mode).
    x_h = jnp.mean(x, axis=3)                       # (B, C, H)
    x_w = jnp.mean(x, axis=2)                       # (B, C, W)
    y_h = jnp.einsum("rc,bch->brh", w1, x_h, precision="highest")
    y_w = jnp.einsum("rc,bcw->brw", w1, x_w, precision="highest")
    inv_std = 1.0 / jnp.sqrt(run_var + eps)
    sc = (gamma * inv_std)[None, :, None]
    bi = (beta - run_mean * gamma * inv_std)[None, :, None]
    y_h = jnp.maximum(y_h * sc + bi, 0.0)
    y_w = jnp.maximum(y_w * sc + bi, 0.0)
    s_h = jax.nn.sigmoid(jnp.einsum("cr,brh->bch", wh, y_h, precision="highest"))
    s_w = jax.nn.sigmoid(jnp.einsum("cr,brw->bcw", ww, y_w, precision="highest"))
    return x * s_h[:, :, :, None] * s_w[:, :, None, :]


if __name__ == "__main__":
    B, C, H, W = 2, 32, 16, 16
    reduction = 4
    Cr = C // reduction

    key = jax.random.PRNGKey(0)
    kx, k1, kh, kw = jax.random.split(key, 4)

    x = jax.random.normal(kx, (B, C, H, W), dtype=jnp.float32)
    # 1x1 conv weights (kernel_size=1 -> plain channel matrices), no bias.
    w1 = jax.random.normal(k1, (Cr, C), dtype=jnp.float32) / jnp.sqrt(C)
    wh = jax.random.normal(kh, (C, Cr), dtype=jnp.float32) / jnp.sqrt(Cr)
    ww = jax.random.normal(kw, (C, Cr), dtype=jnp.float32) / jnp.sqrt(Cr)

    # Deterministic BatchNorm2d parameters / running stats (eval mode).
    gamma = 1.0 + 0.1 * jnp.arange(Cr, dtype=jnp.float32)
    beta = 0.05 * jnp.arange(Cr, dtype=jnp.float32)
    run_mean = 0.01 * jnp.arange(Cr, dtype=jnp.float32)
    run_var = 1.0 + 0.02 * jnp.arange(Cr, dtype=jnp.float32)

    out = ca_block(x, w1, wh, ww, gamma, beta, run_mean, run_var)
    out = jax.block_until_ready(out)

    ref = _reference(x, w1, wh, ww, gamma, beta, run_mean, run_var)
    np.testing.assert_allclose(np.asarray(out), np.asarray(ref),
                               rtol=1e-5, atol=1e-5)
    print("KERNEL_OK")
</pallas_src>

<mosaic_0001>
module attributes {stable_mosaic.version = 11 : i64} {
  func.func @_ca_block_kernel(%arg0: i32, %arg1: memref<32x256xf32, #tpu.memory_space<vmem>>, %arg2: memref<8x32xf32, #tpu.memory_space<vmem>>, %arg3: memref<64x8xf32, #tpu.memory_space<vmem>>, %arg4: memref<8x32xf32, #tpu.memory_space<vmem>>, %arg5: memref<256x32xf32, #tpu.memory_space<vmem>>, %arg6: memref<32x256xf32, #tpu.memory_space<vmem>>, %arg7: memref<32x256xf32, #tpu.memory_space<vmem>>, %arg8: memref<32x256xf32, #tpu.memory_space<vmem>>) attributes {dimension_semantics = [#tpu.dimension_semantics<parallel>], iteration_bounds = array<i64: 2>, scalar_prefetch = 0 : i64, scratch_operands = 0 : i64, tpu.core_type = #tpu.core_type<tc>, window_params = [{transform_indices = @transform_0, window_bounds = array<i64: 32, 256>}, {pipeline_mode = #tpu.pipeline_mode<synchronous>, transform_indices = @transform_1, window_bounds = array<i64: 8, 32>}, {pipeline_mode = #tpu.pipeline_mode<synchronous>, transform_indices = @transform_2, window_bounds = array<i64: 64, 8>}, {pipeline_mode = #tpu.pipeline_mode<synchronous>, transform_indices = @transform_3, window_bounds = array<i64: 8, 32>}, {pipeline_mode = #tpu.pipeline_mode<synchronous>, transform_indices = @transform_4, window_bounds = array<i64: 256, 32>}, {pipeline_mode = #tpu.pipeline_mode<synchronous>, transform_indices = @transform_5, window_bounds = array<i64: 32, 256>}, {pipeline_mode = #tpu.pipeline_mode<synchronous>, transform_indices = @transform_6, window_bounds = array<i64: 32, 256>}, {transform_indices = @transform_7, window_bounds = array<i64: 32, 256>}]} {
    %c0 = arith.constant 0 : index
    %c0_0 = arith.constant 0 : index
    %0 = vector.load %arg1[%c0, %c0_0] : memref<32x256xf32, #tpu.memory_space<vmem>>, vector<32x256xf32>
    %c0_1 = arith.constant 0 : index
    %c0_2 = arith.constant 0 : index
    %1 = vector.load %arg5[%c0_1, %c0_2] : memref<256x32xf32, #tpu.memory_space<vmem>>, vector<256x32xf32>
    %cst = arith.constant dense<0.000000e+00> : vector<32x32xf32>
    %2 = tpu.matmul %0, %1, %cst {dimension_numbers = #tpu.dot_dimension_numbers<[1], [0], [0], [1], [0, 0, 1, 1], [], []>} : vector<32x256xf32>, vector<256x32xf32>, vector<32x32xf32> -> vector<32x32xf32>
    %3 = vector.shape_cast %2 : vector<32x32xf32> to vector<1x32x32xf32>
    %c0_3 = arith.constant 0 : index
    %c0_4 = arith.constant 0 : index
    %4 = vector.load %arg2[%c0_3, %c0_4] : memref<8x32xf32, #tpu.memory_space<vmem>>, vector<8x32xf32>
    %5 = vector.shape_cast %4 : vector<8x32xf32> to vector<1x8x32xf32>
    "tpu.trace_start"() <{level = 10 : i32, message = "brc,bcn->brn"}> : () -> ()
    %cst_5 = arith.constant dense<0.000000e+00> : vector<1x8x32xf32>
    %6 = tpu.matmul %5, %3, %cst_5 {dimension_numbers = #tpu.dot_dimension_numbers<[2], [1], [1], [2], [0, 0, 0, 1, 1, 2], [0], [0]>} : vector<1x8x32xf32>, vector<1x32x32xf32>, vector<1x8x32xf32> -> vector<1x8x32xf32>
    "tpu.trace_stop"() : () -> ()
    %c0_6 = arith.constant 0 : index
    %c0_7 = arith.constant 0 : index
    %7 = vector.load %arg4[%c0_6, %c0_7] : memref<8x32xf32, #tpu.memory_space<vmem>>, vector<8x32xf32>
    %8 = vector.shape_cast %7 : vector<8x32xf32> to vector<1x8x32xf32>
    %9 = arith.addf %6, %8 : vector<1x8x32xf32>
    %cst_8 = arith.constant 0.000000e+00 : f32
    %10 = vector.broadcast %cst_8 : f32 to vector<1x8x32xf32>
    %11 = arith.maximumf %9, %10 : vector<1x8x32xf32>
    %c0_9 = arith.constant 0 : index
    %c0_10 = arith.constant 0 : index
    %12 = vector.load %arg3[%c0_9, %c0_10] : memref<64x8xf32, #tpu.memory_space<vmem>>, vector<64x8xf32>
    %13 = vector.shape_cast %12 : vector<64x8xf32> to vector<1x64x8xf32>
    "tpu.trace_start"() <{level = 10 : i32, message = "bcr,brn->bcn"}> : () -> ()
    %cst_11 = arith.constant dense<0.000000e+00> : vector<1x64x32xf32>
    %14 = tpu.matmul %13, %11, %cst_11 {dimension_numbers = #tpu.dot_dimension_numbers<[2], [1], [1], [2], [0, 0, 0, 1, 1, 2], [0], [0]>} : vector<1x64x8xf32>, vector<1x8x32xf32>, vector<1x64x32xf32> -> vector<1x64x32xf32>
    "tpu.trace_stop"() : () -> ()
    %15 = arith.negf %14 : vector<1x64x32xf32>
    %16 = math.exp %15 : vector<1x64x32xf32>
    %cst_12 = arith.constant 1.000000e+00 : f32
    %17 = vector.broadcast %cst_12 : f32 to vector<1x64x32xf32>
    %18 = arith.addf %17, %16 : vector<1x64x32xf32>
    %19 = arith.divf %17, %18 : vector<1x64x32xf32>
    %20 = vector.extract_strided_slice %19 {offsets = [0, 0, 0], sizes = [1, 32, 32], strides = [1, 1, 1]} : vector<1x64x32xf32> to vector<1x32x32xf32>
    %21 = vector.shape_cast %20 : vector<1x32x32xf32> to vector<32x32xf32>
    %22 = vector.extract_strided_slice %19 {offsets = [0, 32, 0], sizes = [1, 32, 32], strides = [1, 1, 1]} : vector<1x64x32xf32> to vector<1x32x32xf32>
    %23 = vector.shape_cast %22 : vector<1x32x32xf32> to vector<32x32xf32>
    %c0_13 = arith.constant 0 : index
    %c0_14 = arith.constant 0 : index
    %24 = vector.load %arg6[%c0_13, %c0_14] : memref<32x256xf32, #tpu.memory_space<vmem>>, vector<32x256xf32>
    %cst_15 = arith.constant dense<0.000000e+00> : vector<32x256xf32>
    %25 = tpu.matmul %21, %24, %cst_15 {dimension_numbers = #tpu.dot_dimension_numbers<[1], [0], [0], [1], [0, 0, 1, 1], [], []>} : vector<32x32xf32>, vector<32x256xf32>, vector<32x256xf32> -> vector<32x256xf32>
    %c0_16 = arith.constant 0 : index
    %c0_17 = arith.constant 0 : index
    %26 = vector.load %arg7[%c0_16, %c0_17] : memref<32x256xf32, #tpu.memory_space<vmem>>, vector<32x256xf32>
    %cst_18 = arith.constant dense<0.000000e+00> : vector<32x256xf32>
    %27 = tpu.matmul %23, %26, %cst_18 {dimension_numbers = #tpu.dot_dimension_numbers<[1], [0], [0], [1], [0, 0, 1, 1], [], []>} : vector<32x32xf32>, vector<32x256xf32>, vector<32x256xf32> -> vector<32x256xf32>
    %28 = arith.mulf %25, %27 : vector<32x256xf32>
    %29 = arith.mulf %0, %28 : vector<32x256xf32>
    %c0_19 = arith.constant 0 : index
    %c0_20 = arith.constant 0 : index
    %30 = vector.load %arg8[%c0_19, %c0_20] : memref<32x256xf32, #tpu.memory_space<vmem>>, vector<32x256xf32>
    tpu.vector_store %arg8[%c0_19, %c0_20], %29 {strides = array<i32>} : memref<32x256xf32, #tpu.memory_space<vmem>>, vector<32x256xf32>,
    return
  }
  func.func @transform_0(%arg0: i32) -> (i32, i32) {
    %c0_i32 = arith.constant 0 : i32
    %c0_i32_0 = arith.constant 0 : i32
    return %arg0, %c0_i32 : i32, i32
  }
  func.func @transform_1(%arg0: i32) -> (i32, i32) {
    %c0_i32 = arith.constant 0 : i32
    %c0_i32_0 = arith.constant 0 : i32
    %c0_i32_1 = arith.constant 0 : i32
    return %c0_i32, %c0_i32_0 : i32, i32
  }
  func.func @transform_2(%arg0: i32) -> (i32, i32) {
    %c0_i32 = arith.constant 0 : i32
    %c0_i32_0 = arith.constant 0 : i32
    %c0_i32_1 = arith.constant 0 : i32
    return %c0_i32, %c0_i32_0 : i32, i32
  }
  func.func @transform_3(%arg0: i32) -> (i32, i32) {
    %c0_i32 = arith.constant 0 : i32
    %c0_i32_0 = arith.constant 0 : i32
    %c0_i32_1 = arith.constant 0 : i32
    return %c0_i32, %c0_i32_0 : i32, i32
  }
  func.func @transform_4(%arg0: i32) -> (i32, i32) {
    %c0_i32 = arith.constant 0 : i32
    %c0_i32_0 = arith.constant 0 : i32
    %c0_i32_1 = arith.constant 0 : i32
    return %c0_i32, %c0_i32_0 : i32, i32
  }
  func.func @transform_5(%arg0: i32) -> (i32, i32) {
    %c0_i32 = arith.constant 0 : i32
    %c0_i32_0 = arith.constant 0 : i32
    %c0_i32_1 = arith.constant 0 : i32
    return %c0_i32, %c0_i32_0 : i32, i32
  }
  func.func @transform_6(%arg0: i32) -> (i32, i32) {
    %c0_i32 = arith.constant 0 : i32
    %c0_i32_0 = arith.constant 0 : i32
    %c0_i32_1 = arith.constant 0 : i32
    return %c0_i32, %c0_i32_0 : i32, i32
  }
  func.func @transform_7(%arg0: i32) -> (i32, i32) {
    %c0_i32 = arith.constant 0 : i32
    %c0_i32_0 = arith.constant 0 : i32
    return %arg0, %c0_i32 : i32, i32
  }
}

module attributes {stable_mosaic.version = 11 : i64} {
  func.func @_ca_block_kernel(%arg0: i32, %arg1: memref<32x256xf32, #tpu.memory_space<vmem>>, %arg2: memref<8x32xf32, #tpu.memory_space<vmem>>, %arg3: memref<64x8xf32, #tpu.memory_space<vmem>>, %arg4: memref<8x32xf32, #tpu.memory_space<vmem>>, %arg5: memref<256x32xf32, #tpu.memory_space<vmem>>, %arg6: memref<32x256xf32, #tpu.memory_space<vmem>>, %arg7: memref<32x256xf32, #tpu.memory_space<vmem>>, %arg8: memref<32x256xf32, #tpu.memory_space<vmem>>) attributes {dimension_semantics = [#tpu.dimension_semantics<parallel>], iteration_bounds = array<i64: 2>, scalar_prefetch = 0 : i64, scratch_operands = 0 : i64, tpu.core_type = #tpu.core_type<tc>, window_params = [{transform_indices = @transform_0, window_bounds = array<i64: 32, 256>}, {pipeline_mode = #tpu.pipeline_mode<synchronous>, transform_indices = @transform_1, window_bounds = array<i64: 8, 32>}, {pipeline_mode = #tpu.pipeline_mode<synchronous>, transform_indices = @transform_2, window_bounds = array<i64: 64, 8>}, {pipeline_mode = #tpu.pipeline_mode<synchronous>, transform_indices = @transform_3, window_bounds = array<i64: 8, 32>}, {pipeline_mode = #tpu.pipeline_mode<synchronous>, transform_indices = @transform_4, window_bounds = array<i64: 256, 32>}, {pipeline_mode = #tpu.pipeline_mode<synchronous>, transform_indices = @transform_5, window_bounds = array<i64: 32, 256>}, {pipeline_mode = #tpu.pipeline_mode<synchronous>, transform_indices = @transform_6, window_bounds = array<i64: 32, 256>}, {transform_indices = @transform_7, window_bounds = array<i64: 32, 256>}]} {
    %c0 = arith.constant 0 : index
    %c0_0 = arith.constant 0 : index
    %0 = vector.load %arg1[%c0, %c0_0] : memref<32x256xf32, #tpu.memory_space<vmem>>, vector<32x256xf32>
    %c0_1 = arith.constant 0 : index
    %c0_2 = arith.constant 0 : index
    %1 = vector.load %arg5[%c0_1, %c0_2] : memref<256x32xf32, #tpu.memory_space<vmem>>, vector<256x32xf32>
    %cst = arith.constant dense<0.000000e+00> : vector<32x32xf32>
    %2 = tpu.matmul %0, %1, %cst {dimension_numbers = #tpu.dot_dimension_numbers<[1], [0], [0], [1], [0, 0, 1, 1], [], []>} : vector<32x256xf32>, vector<256x32xf32>, vector<32x32xf32> -> vector<32x32xf32>
    %3 = vector.shape_cast %2 : vector<32x32xf32> to vector<1x32x32xf32>
    %c0_3 = arith.constant 0 : index
    %c0_4 = arith.constant 0 : index
    %4 = vector.load %arg2[%c0_3, %c0_4] : memref<8x32xf32, #tpu.memory_space<vmem>>, vector<8x32xf32>
    %5 = vector.shape_cast %4 : vector<8x32xf32> to vector<1x8x32xf32>
    "tpu.trace_start"() <{level = 10 : i32, message = "brc,bcn->brn"}> : () -> ()
    %cst_5 = arith.constant dense<0.000000e+00> : vector<1x8x32xf32>
    %6 = tpu.matmul %5, %3, %cst_5 {dimension_numbers = #tpu.dot_dimension_numbers<[2], [1], [1], [2], [0, 0, 0, 1, 1, 2], [0], [0]>} : vector<1x8x32xf32>, vector<1x32x32xf32>, vector<1x8x32xf32> -> vector<1x8x32xf32>
    "tpu.trace_stop"() : () -> ()
    %c0_6 = arith.constant 0 : index
    %c0_7 = arith.constant 0 : index
    %7 = vector.load %arg4[%c0_6, %c0_7] : memref<8x32xf32, #tpu.memory_space<vmem>>, vector<8x32xf32>
    %8 = vector.shape_cast %7 : vector<8x32xf32> to vector<1x8x32xf32>
    %9 = arith.addf %6, %8 : vector<1x8x32xf32>
    %cst_8 = arith.constant 0.000000e+00 : f32
    %10 = vector.broadcast %cst_8 : f32 to vector<1x8x32xf32>
    %11 = arith.maximumf %9, %10 : vector<1x8x32xf32>
    %c0_9 = arith.constant 0 : index
    %c0_10 = arith.constant 0 : index
    %12 = vector.load %arg3[%c0_9, %c0_10] : memref<64x8xf32, #tpu.memory_space<vmem>>, vector<64x8xf32>
    %13 = vector.shape_cast %12 : vector<64x8xf32> to vector<1x64x8xf32>
    "tpu.trace_start"() <{level = 10 : i32, message = "bcr,brn->bcn"}> : () -> ()
    %cst_11 = arith.constant dense<0.000000e+00> : vector<1x64x32xf32>
    %14 = tpu.matmul %13, %11, %cst_11 {dimension_numbers = #tpu.dot_dimension_numbers<[2], [1], [1], [2], [0, 0, 0, 1, 1, 2], [0], [0]>} : vector<1x64x8xf32>, vector<1x8x32xf32>, vector<1x64x32xf32> -> vector<1x64x32xf32>
    "tpu.trace_stop"() : () -> ()
    %15 = arith.negf %14 : vector<1x64x32xf32>
    %16 = math.exp %15 : vector<1x64x32xf32>
    %cst_12 = arith.constant 1.000000e+00 : f32
    %17 = vector.broadcast %cst_12 : f32 to vector<1x64x32xf32>
    %18 = arith.addf %17, %16 : vector<1x64x32xf32>
    %19 = arith.divf %17, %18 : vector<1x64x32xf32>
    %20 = vector.extract_strided_slice %19 {offsets = [0, 0, 0], sizes = [1, 32, 32], strides = [1, 1, 1]} : vector<1x64x32xf32> to vector<1x32x32xf32>
    %21 = vector.shape_cast %20 : vector<1x32x32xf32> to vector<32x32xf32>
    %22 = vector.extract_strided_slice %19 {offsets = [0, 32, 0], sizes = [1, 32, 32], strides = [1, 1, 1]} : vector<1x64x32xf32> to vector<1x32x32xf32>
    %23 = vector.shape_cast %22 : vector<1x32x32xf32> to vector<32x32xf32>
    %c0_13 = arith.constant 0 : index
    %c0_14 = arith.constant 0 : index
    %24 = vector.load %arg6[%c0_13, %c0_14] : memref<32x256xf32, #tpu.memory_space<vmem>>, vector<32x256xf32>
    %cst_15 = arith.constant dense<0.000000e+00> : vector<32x256xf32>
    %25 = tpu.matmul %21, %24, %cst_15 {dimension_numbers = #tpu.dot_dimension_numbers<[1], [0], [0], [1], [0, 0, 1, 1], [], []>} : vector<32x32xf32>, vector<32x256xf32>, vector<32x256xf32> -> vector<32x256xf32>
    %c0_16 = arith.constant 0 : index
    %c0_17 = arith.constant 0 : index
    %26 = vector.load %arg7[%c0_16, %c0_17] : memref<32x256xf32, #tpu.memory_space<vmem>>, vector<32x256xf32>
    %cst_18 = arith.constant dense<0.000000e+00> : vector<32x256xf32>
    %27 = tpu.matmul %23, %26, %cst_18 {dimension_numbers = #tpu.dot_dimension_numbers<[1], [0], [0], [1], [0, 0, 1, 1], [], []>} : vector<32x32xf32>, vector<32x256xf32>, vector<32x256xf32> -> vector<32x256xf32>
    %28 = arith.mulf %25, %27 : vector<32x256xf32>
    %29 = arith.mulf %0, %28 : vector<32x256xf32>
    %c0_19 = arith.constant 0 : index
    %c0_20 = arith.constant 0 : index
    %30 = vector.load %arg8[%c0_19, %c0_20] : memref<32x256xf32, #tpu.memory_space<vmem>>, vector<32x256xf32>
    tpu.vector_store %arg8[%c0_19, %c0_20], %29 {strides = array<i32>} : memref<32x256xf32, #tpu.memory_space<vmem>>, vector<32x256xf32>,
    return
  }
  func.func @transform_0(%arg0: i32) -> (i32, i32) {
    %c0_i32 = arith.constant 0 : i32
    %c0_i32_0 = arith.constant 0 : i32
    return %arg0, %c0_i32 : i32, i32
  }
  func.func @transform_1(%arg0: i32) -> (i32, i32) {
    %c0_i32 = arith.constant 0 : i32
    %c0_i32_0 = arith.constant 0 : i32
    %c0_i32_1 = arith.constant 0 : i32
    return %c0_i32, %c0_i32_0 : i32, i32
  }
  func.func @transform_2(%arg0: i32) -> (i32, i32) {
    %c0_i32 = arith.constant 0 : i32
    %c0_i32_0 = arith.constant 0 : i32
    %c0_i32_1 = arith.constant 0 : i32
    return %c0_i32, %c0_i32_0 : i32, i32
  }
  func.func @transform_3(%arg0: i32) -> (i32, i32) {
    %c0_i32 = arith.constant 0 : i32
    %c0_i32_0 = arith.constant 0 : i32
    %c0_i32_1 = arith.constant 0 : i32
    return %c0_i32, %c0_i32_0 : i32, i32
  }
  func.func @transform_4(%arg0: i32) -> (i32, i32) {
    %c0_i32 = arith.constant 0 : i32
    %c0_i32_0 = arith.constant 0 : i32
    %c0_i32_1 = arith.constant 0 : i32
    return %c0_i32, %c0_i32_0 : i32, i32
  }
  func.func @transform_5(%arg0: i32) -> (i32, i32) {
    %c0_i32 = arith.constant 0 : i32
    %c0_i32_0 = arith.constant 0 : i32
    %c0_i32_1 = arith.constant 0 : i32
    return %c0_i32, %c0_i32_0 : i32, i32
  }
  func.func @transform_6(%arg0: i32) -> (i32, i32) {
    %c0_i32 = arith.constant 0 : i32
    %c0_i32_0 = arith.constant 0 : i32
    %c0_i32_1 = arith.constant 0 : i32
    return %c0_i32, %c0_i32_0 : i32, i32
  }
  func.func @transform_7(%arg0: i32) -> (i32, i32) {
    %c0_i32 = arith.constant 0 : i32
    %c0_i32_0 = arith.constant 0 : i32
    return %arg0, %c0_i32 : i32, i32
  }
}

</mosaic_0001>

<llo_original>
// kernel: tpu_custom_call.1
$region0: #{tpu_custom_call.1}
  #allocation0 [shape = 'u32[]', space=smem, size = 0x4, offset = 0x4, fixed_abs, tag = 'smem constant byte address 0x4 - core index']
  #allocation1 [shape = 'u32[144,128]{1,0:T(1,128)}', space=vmem, size = 0x12000, scoped, tag = 'internal scratch']
  %s0 = inlined_call_operand.vmem [shape: f32[64,256], index: 0, kind: input, shape index: {}]
  %s1 = inlined_call_operand.vmem [shape: f32[8,32], index: 1, kind: input, shape index: {}]
  %s2 = inlined_call_operand.vmem [shape: f32[64,8], index: 2, kind: input, shape index: {}]
  %s3 = inlined_call_operand.vmem [shape: f32[8,32], index: 3, kind: input, shape index: {}]
  %s4 = inlined_call_operand.vmem [shape: f32[256,32], index: 4, kind: input, shape index: {}]
  %s5 = inlined_call_operand.vmem [shape: f32[32,256], index: 5, kind: input, shape index: {}]
  %s6 = inlined_call_operand.vmem [shape: f32[32,256], index: 6, kind: input, shape index: {}]
  %s7 = inlined_call_operand.hbm [shape: f32[64,256], index: 7, kind: output, shape index: {}]
  %s8 = sld [smem:[#allocation0]]
  $region61: #{tpu_custom_call.1} parent=0
    _
  %s10 = ssub.s32 1, %s8
  %s11 = scalar_select 0, %s10, %s8
  $region1: #{tpu_custom_call.1} parent=0
    #allocation2 [shape = 'u8[65536]{0}', space=vmem, size = 0x10000, scoped, tag = 'output window, operand 0']
    #allocation3 [shape = 's32[2]{0}', space=sflag, size = 0x8, scoped, tag = 'scoped memory for tpu_custom_call.1']
    %12 = vsyncpa [#allocation3], 0
    %s13 = scalar_lea.sflag [#allocation3], 1
    %14 = vsyncpa %s13, 0
    loop: start=0, step=1, limit=4
    $region2: #{tpu_custom_call.1} parent=1 // loop_pre_header
      _
    $region3: #{tpu_custom_call.1} parent=1 // loop_header
      %s16 = sphi 0, %s20
      %p17 = scmp.ge.s32.totalorder %s16, 4
      %s26 = sphi 0, %s28
      %s29 = sphi 0, %s26
      %s30 = sphi 0, %s29
      %s46 = sphi 0, %s30
      %s50 = sphi 0, %s50
      %s52 = sphi 0, %s50
      %s53 = sphi 0, %s52
      %s67 = sphi 0, %s53
      %s71 = sphi 0, %s71
      %s73 = sphi 0, %s71
      %s74 = sphi 0, %s73
      %s88 = sphi 0, %s74
      %s92 = sphi 0, %s92
      %s94 = sphi 0, %s92
      %s95 = sphi 0, %s94
      %s109 = sphi 0, %s95
      %s113 = sphi 0, %s113
      %s115 = sphi 0, %s113
      %s116 = sphi 0, %s115
      %s130 = sphi 0, %s116
      %s134 = sphi 0, %s134
      %s136 = sphi 0, %s134
      %s137 = sphi 0, %s136
      %s151 = sphi 0, %s137
      %s155 = sphi 0, %s155
      %s157 = sphi 0, %s155
      %s158 = sphi 0, %s157
      %s172 = sphi 0, %s158
      %s178 = sphi 0, %s180
      %s181 = sphi 0, %s178
      %s182 = sphi 0, %s181
      %s198 = sphi 0, %s182
    $region4: #{tpu_custom_call.1} parent=1 // loop_header_branch
      %19 = sbr.rel (%p17) target = $region8
    $region5: #{tpu_custom_call.1} parent=1 // loop_body
      %s21 = ssub.s32 %s16, 1
      %s22 = ssub.s32 %s16, 2
      %s23 = sadd.s32 %s16, 1
      %s24 = ssub.s32 %s16, %s23
      %p25 = scmp.eq.s32.totalorder %s24, 0
      %s27 = sadd.s32 %s26, 1
      %s28 = scalar_select %p25, %s26, %s27
      %p31 = pneg %p25
      %p32 = scmp.eq.s32.totalorder %s16, 1
      %p33 = por %p31, %p32
      %p34 = scmp.ne.s32.totalorder %s26, %s29
      %p35 = scmp.eq.s32.totalorder %s16, 0
      %p36 = por %p34, %p35
      %p37 = scmp.ne.s32.totalorder %s26, %s29
      %p38 = scmp.eq.s32.totalorder %s21, 1
      %p39 = por %p37, %p38
      %p40 = scmp.ne.s32.totalorder %s29, %s30
      %p41 = scmp.eq.s32.totalorder %s21, 0
      %p42 = por %p40, %p41
      %p43 = scmp.ne.s32.totalorder %s29, %s30
      %p44 = scmp.eq.s32.totalorder %s22, 1
      %p45 = por %p43, %p44
      %p47 = scmp.ne.s32.totalorder %s30, %s46
      %p48 = scmp.eq.s32.totalorder %s22, 0
      %p49 = por %p47, %p48
      %s51 = sadd.s32 %s50, 1
      %p54 = scmp.eq.s32.totalorder %s16, 1
      %p55 = scmp.ne.s32.totalorder %s50, %s52
      %p56 = scmp.eq.s32.totalorder %s16, 0
      %p57 = por %p55, %p56
      %p58 = scmp.ne.s32.totalorder %s50, %s52
      %p59 = scmp.eq.s32.totalorder %s21, 1
      %p60 = por %p58, %p59
      %p61 = scmp.ne.s32.totalorder %s52, %s53
      %p62 = scmp.eq.s32.totalorder %s21, 0
      %p63 = por %p61, %p62
      %p64 = scmp.ne.s32.totalorder %s52, %s53
      %p65 = scmp.eq.s32.totalorder %s22, 1
      %p66 = por %p64, %p65
      %p68 = scmp.ne.s32.totalorder %s53, %s67
      %p69 = scmp.eq.s32.totalorder %s22, 0
      %p70 = por %p68, %p69
      %s72 = sadd.s32 %s71, 1
      %p75 = scmp.eq.s32.totalorder %s16, 1
      %p76 = scmp.ne.s32.totalorder %s71, %s73
      %p77 = scmp.eq.s32.totalorder %s16, 0
      %p78 = por %p76, %p77
      %p79 = scmp.ne.s32.totalorder %s71, %s73
      %p80 = scmp.eq.s32.totalorder %s21, 1
      %p81 = por %p79, %p80
      %p82 = scmp.ne.s32.totalorder %s73, %s74
      %p83 = scmp.eq.s32.totalorder %s21, 0
      %p84 = por %p82, %p83
      %p85 = scmp.ne.s32.totalorder %s73, %s74
      %p86 = scmp.eq.s32.totalorder %s22, 1
      %p87 = por %p85, %p86
      %p89 = scmp.ne.s32.totalorder %s74, %s88
      %p90 = scmp.eq.s32.totalorder %s22, 0
      %p91 = por %p89, %p90
      %s93 = sadd.s32 %s92, 1
      %p96 = scmp.eq.s32.totalorder %s16, 1
      %p97 = scmp.ne.s32.totalorder %s92, %s94
      %p98 = scmp.eq.s32.totalorder %s16, 0
      %p99 = por %p97, %p98
      %p100 = scmp.ne.s32.totalorder %s92, %s94
      %p101 = scmp.eq.s32.totalorder %s21, 1
      %p102 = por %p100, %p101
      %p103 = scmp.ne.s32.totalorder %s94, %s95
      %p104 = scmp.eq.s32.totalorder %s21, 0
      %p105 = por %p103, %p104
      %p106 = scmp.ne.s32.totalorder %s94, %s95
      %p107 = scmp.eq.s32.totalorder %s22, 1
      %p108 = por %p106, %p107
      %p110 = scmp.ne.s32.totalorder %s95, %s109
      %p111 = scmp.eq.s32.totalorder %s22, 0
      %p112 = por %p110, %p111
      %s114 = sadd.s32 %s113, 1
      %p117 = scmp.eq.s32.totalorder %s16, 1
      %p118 = scmp.ne.s32.totalorder %s113, %s115
      %p119 = scmp.eq.s32.totalorder %s16, 0
      %p120 = por %p118, %p119
      %p121 = scmp.ne.s32.totalorder %s113, %s115
      %p122 = scmp.eq.s32.totalorder %s21, 1
      %p123 = por %p121, %p122
      %p124 = scmp.ne.s32.totalorder %s115, %s116
      %p125 = scmp.eq.s32.totalorder %s21, 0
      %p126 = por %p124, %p125
      %p127 = scmp.ne.s32.totalorder %s115, %s116
      %p128 = scmp.eq.s32.totalorder %s22, 1
      %p129 = por %p127, %p128
      %p131 = scmp.ne.s32.totalorder %s116, %s130
      %p132 = scmp.eq.s32.totalorder %s22, 0
      %p133 = por %p131, %p132
      %s135 = sadd.s32 %s134, 1
      %p138 = scmp.eq.s32.totalorder %s16, 1
      %p139 = scmp.ne.s32.totalorder %s134, %s136
      %p140 = scmp.eq.s32.totalorder %s16, 0
      %p141 = por %p139, %p140
      %p142 = scmp.ne.s32.totalorder %s134, %s136
      %p143 = scmp.eq.s32.totalorder %s21, 1
      %p144 = por %p142, %p143
      %p145 = scmp.ne.s32.totalorder %s136, %s137
      %p146 = scmp.eq.s32.totalorder %s21, 0
      %p147 = por %p145, %p146
      %p148 = scmp.ne.s32.totalorder %s136, %s137
      %p149 = scmp.eq.s32.totalorder %s22, 1
      %p150 = por %p148, %p149
      %p152 = scmp.ne.s32.totalorder %s137, %s151
      %p153 = scmp.eq.s32.totalorder %s22, 0
      %p154 = por %p152, %p153
      %s156 = sadd.s32 %s155, 1
      %p159 = scmp.eq.s32.totalorder %s16, 1
      %p160 = scmp.ne.s32.totalorder %s155, %s157
      %p161 = scmp.eq.s32.totalorder %s16, 0
      %p162 = por %p160, %p161
      %p163 = scmp.ne.s32.totalorder %s155, %s157
      %p164 = scmp.eq.s32.totalorder %s21, 1
      %p165 = por %p163, %p164
      %p166 = scmp.ne.s32.totalorder %s157, %s158
      %p167 = scmp.eq.s32.totalorder %s21, 0
      %p168 = por %p166, %p167
      %p169 = scmp.ne.s32.totalorder %s157, %s158
      %p170 = scmp.eq.s32.totalorder %s22, 1
      %p171 = por %p169, %p170
      %p173 = scmp.ne.s32.totalorder %s158, %s172
      %p174 = scmp.eq.s32.totalorder %s22, 0
      %p175 = por %p173, %p174
      %s176 = ssub.s32 %s16, %s23
      %p177 = scmp.eq.s32.totalorder %s176, 0
      %s179 = sadd.s32 %s178, 1
      %s180 = scalar_select %p177, %s178, %s179
      %p183 = pneg %p177
      %p184 = scmp.eq.s32.totalorder %s16, 1
      %p185 = por %p183, %p184
      %p186 = scmp.ne.s32.totalorder %s178, %s181
      %p187 = scmp.eq.s32.totalorder %s16, 0
      %p188 = por %p186, %p187
      %p189 = scmp.ne.s32.totalorder %s178, %s181
      %p190 = scmp.eq.s32.totalorder %s21, 1
      %p191 = por %p189, %p190
      %p192 = scmp.ne.s32.totalorder %s181, %s182
      %p193 = scmp.eq.s32.totalorder %s21, 0
      %p194 = por %p192, %p193
      %p195 = scmp.ne.s32.totalorder %s181, %s182
      %p196 = scmp.eq.s32.totalorder %s22, 1
      %p197 = por %p195, %p196
      %p199 = scmp.ne.s32.totalorder %s182, %s198
      %p200 = scmp.eq.s32.totalorder %s22, 0
      %p201 = por %p199, %p200
      %p202 = scmp.le.s32.totalorder 1, %s16
      %p203 = scmp.lt.s32.totalorder %s16, 3
      %p204 = pnand %p202, %p203
      %p205 = pneg %p204
      // Predicated region
      $region9: #{tpu_custom_call.1} parent=5 // pred_check
        _
      $region10: #{tpu_custom_call.1} parent=5 // pred_check_branch
        %207 = sbr.rel (%p204) target = $region12
      $region11: #{tpu_custom_call.1} parent=5 // pred_region
        %s208 = ssub.s32 %s16, 1
        // Predicated region
        $region13: #{tpu_custom_call.1} parent=11 // pred_check
          %p209 = pneg %p63
        $region14: #{tpu_custom_call.1} parent=11 // pred_check_branch
          %211 = sbr.rel (%p209) target = $region16
        $region15: #{tpu_custom_call.1} parent=11 // pred_region
          _
        $region16: #{tpu_custom_call.1} parent=11 // pred_fallthru
          _
        // Predicated region
        $region17: #{tpu_custom_call.1} parent=11 // pred_check
          %p212 = pneg %p84
        $region18: #{tpu_custom_call.1} parent=11 // pred_check_branch
          %214 = sbr.rel (%p212) target = $region20
        $region19: #{tpu_custom_call.1} parent=11 // pred_region
          _
        $region20: #{tpu_custom_call.1} parent=11 // pred_fallthru
          _
        // Predicated region
        $region21: #{tpu_custom_call.1} parent=11 // pred_check
          %p215 = pneg %p105
        $region22: #{tpu_custom_call.1} parent=11 // pred_check_branch
          %217 = sbr.rel (%p215) target = $region24
        $region23: #{tpu_custom_call.1} parent=11 // pred_region
          _
        $region24: #{tpu_custom_call.1} parent=11 // pred_fallthru
          _
        // Predicated region
        $region25: #{tpu_custom_call.1} parent=11 // pred_check
          %p218 = pneg %p126
        $region26: #{tpu_custom_call.1} parent=11 // pred_check_branch
          %220 = sbr.rel (%p218) target = $region28
        $region27: #{tpu_custom_call.1} parent=11 // pred_region
          _
        $region28: #{tpu_custom_call.1} parent=11 // pred_fallthru
          _
        // Predicated region
        $region29: #{tpu_custom_call.1} parent=11 // pred_check
          %p221 = pneg %p147
        $region30: #{tpu_custom_call.1} parent=11 // pred_check_branch
          %223 = sbr.rel (%p221) target = $region32
        $region31: #{tpu_custom_call.1} parent=11 // pred_region
          _
        $region32: #{tpu_custom_call.1} parent=11 // pred_fallthru
          _
        // Predicated region
        $region33: #{tpu_custom_call.1} parent=11 // pred_check
          %p224 = pneg %p168
        $region34: #{tpu_custom_call.1} parent=11 // pred_check_branch
          %226 = sbr.rel (%p224) target = $region36
        $region35: #{tpu_custom_call.1} parent=11 // pred_region
          _
        $region36: #{tpu_custom_call.1} parent=11 // pred_fallthru
          _
      $region12: #{tpu_custom_call.1} parent=5 // pred_fallthru
        _
      %p227 = scmp.lt.s32.totalorder %s16, 2
      // Predicated region
      $region37: #{tpu_custom_call.1} parent=5 // pred_check
        %p228 = pneg %p227
      $region38: #{tpu_custom_call.1} parent=5 // pred_check_branch
        %230 = sbr.rel (%p228) target = $region40
      $region39: #{tpu_custom_call.1} parent=5 // pred_region
        // Predicated region
        $region41: #{tpu_custom_call.1} parent=39 // pred_check
          %p231 = pneg %p36
        $region42: #{tpu_custom_call.1} parent=39 // pred_check_branch
          %233 = sbr.rel (%p231) target = $region44
        $region43: #{tpu_custom_call.1} parent=39 // pred_region
          %s234 = smul.u32 4, %s16
          %p235 = scmp.lt.s32.totalorder %s234, 7
          %s236 = scalar_select %p235, %s234, 7
          %s237 = smul.addr %s236, 2
          %s238 = smul.addr %s237, 8
          %s239 = scalar_lea.vmem %s0, %s238
          %s240 = smul.u32 4, %s16
        $region44: #{tpu_custom_call.1} parent=39 // pred_fallthru
          _
      $region40: #{tpu_custom_call.1} parent=5 // pred_fallthru
        _
      %p241 = scmp.le.s32.totalorder 1, %s16
      %p242 = scmp.lt.s32.totalorder %s16, 3
      %p243 = pnand %p241, %p242
      %p244 = pneg %p243
      // Predicated region
      $region45: #{tpu_custom_call.1} parent=5 // pred_check
        _
      $region46: #{tpu_custom_call.1} parent=5 // pred_check_branch
        %246 = sbr.rel (%p243) target = $region48
      $region47: #{tpu_custom_call.1} parent=5 // pred_region
        %s247 = ssub.s32 %s16, 1
        %s248 = smul.u32 4, %s21
        %p249 = scmp.lt.s32.totalorder %s248, 7
        %s250 = scalar_select %p249, %s248, 7
        %s251 = smul.addr %s250, 2
        %s252 = smul.addr %s251, 8
        %s253 = scalar_lea.vmem %s0, %s252
        %p254 = pneg %p42
        %p255 = pneg %p39
        %p256 = pneg %p63
        %p257 = pneg %p60
        %p258 = pneg %p84
        %p259 = pneg %p81
        %p260 = pneg %p105
        %p261 = pneg %p102
        %p262 = pneg %p126
        %p263 = pneg %p123
        %p264 = pneg %p147
        %p265 = pneg %p144
        %p266 = pneg %p168
        %p267 = pneg %p165
        %p268 = pneg %p194
        %p269 = pneg %p191
        %s270 = sand.u32 %s181, 1
        %s271 = scalar_lea.sflag [#allocation3], %s270
        %s272 = sand.u32 %s181, 1
        %s273 = smul.addr %s272, 64
        %s274 = scalar_lea.vmem [#allocation2], %s273
        %s275 = smul.u32 4, %s21
        %p276 = scmp.lt.s32.totalorder %s275, 7
        %s277 = scalar_select %p276, %s275, 7
        %s278 = smul.addr %s277, 2
        %s279 = smul.addr %s278, 8
        %s280 = scalar_lea.vmem %s0, %s279
        %s281 = smul.u32 4, %s21
        %s282 = smul.u32 4, %s21
        %v283 = vld [vmem:[%s280] sm:$0xff]
        %v284 = vld [vmem:[%s280 + $0x8] sm:$0xff]
        %v285 = vld [vmem:[%s280 + $0x10] sm:$0xff]
        %v286 = vld [vmem:[%s280 + $0x18] sm:$0xff]
        %v287 = vld [vmem:[%s280 + $0x20] sm:$0xff]
        %v288 = vld [vmem:[%s280 + $0x28] sm:$0xff]
        %v289 = vld [vmem:[%s280 + $0x30] sm:$0xff]
        %v290 = vld [vmem:[%s280 + $0x38] sm:$0xff]
        %v291 = vld [vmem:[%s4] sm:$0xff]
        %v292 = vld [vmem:[%s4 + $0x8] sm:$0xff]
        %v293 = vld [vmem:[%s4 + $0x10] sm:$0xff]
        %v294 = vld [vmem:[%s4 + $0x18] sm:$0xff]
        %v295 = vld [vmem:[%s4 + $0x20] sm:$0xff]
        %v296 = vld [vmem:[%s4 + $0x28] sm:$0xff]
        %v297 = vld [vmem:[%s4 + $0x30] sm:$0xff]
        %v298 = vld [vmem:[%s4 + $0x38] sm:$0xff]
        %v299 = vld [vmem:[%s4 + $0x40] sm:$0xff]
        %v300 = vld [vmem:[%s4 + $0x48] sm:$0xff]
        %v301 = vld [vmem:[%s4 + $0x50] sm:$0xff]
        %v302 = vld [vmem:[%s4 + $0x58] sm:$0xff]
        %v303 = vld [vmem:[%s4 + $0x60] sm:$0xff]
        %v304 = vld [vmem:[%s4 + $0x68] sm:$0xff]
        %v305 = vld [vmem:[%s4 + $0x70] sm:$0xff]
        %v306 = vld [vmem:[%s4 + $0x78] sm:$0xff]
        %v307 = vld [vmem:[%s4 + $0x80] sm:$0xff]
        %v308 = vld [vmem:[%s4 + $0x88] sm:$0xff]
        %v309 = vld [vmem:[%s4 + $0x90] sm:$0xff]
        %v310 = vld [vmem:[%s4 + $0x98] sm:$0xff]
        %v311 = vld [vmem:[%s4 + $0xa0] sm:$0xff]
        %v312 = vld [vmem:[%s4 + $0xa8] sm:$0xff]
        %v313 = vld [vmem:[%s4 + $0xb0] sm:$0xff]
        %v314 = vld [vmem:[%s4 + $0xb8] sm:$0xff]
        %v315 = vld [vmem:[%s4 + $0xc0] sm:$0xff]
        %v316 = vld [vmem:[%s4 + $0xc8] sm:$0xff]
        %v317 = vld [vmem:[%s4 + $0xd0] sm:$0xff]
        %v318 = vld [vmem:[%s4 + $0xd8] sm:$0xff]
        %v319 = vld [vmem:[%s4 + $0xe0] sm:$0xff]
        %v320 = vld [vmem:[%s4 + $0xe8] sm:$0xff]
        %v321 = vld [vmem:[%s4 + $0xf0] sm:$0xff]
        %v322 = vld [vmem:[%s4 + $0xf8] sm:$0xff]
        %323 = vmatprep.subr.mxu0 0.0
        %324 = vmatpush1.msra.mxu0 %v306
        %325 = vmatprep.subr.mxu0 0.0
        %326 = vmatpush1.msra.mxu0 %v305
        %327 = vmatprep.subr.mxu0 0.0
        %328 = vmatpush1.msra.mxu0 %v304
        %329 = vmatprep.subr.mxu0 0.0
        %330 = vmatpush1.msra.mxu0 %v303
        %331 = vmatprep.subr.mxu0 0.0
        %332 = vmatpush1.msra.mxu0 %v302
        %333 = vmatprep.subr.mxu0 0.0
        %334 = vmatpush1.msra.mxu0 %v301
        %335 = vmatprep.subr.mxu0 0.0
        %336 = vmatpush1.msra.mxu0 %v300
        %337 = vmatprep.subr.mxu0 0.0
        %338 = vmatpush1.msra.mxu0 %v299
        %339 = vmatprep.subr.mxu0 0.0
        %340 = vmatpush1.msra.mxu0 %v298
        %341 = vmatprep.subr.mxu0 0.0
        %342 = vmatpush1.msra.mxu0 %v297
        %343 = vmatprep.subr.mxu0 0.0
        %344 = vmatpush1.msra.mxu0 %v296
        %345 = vmatprep.subr.mxu0 0.0
        %346 = vmatpush1.msra.mxu0 %v295
        %347 = vmatprep.subr.mxu0 0.0
        %348 = vmatpush1.msra.mxu0 %v294
        %349 = vmatprep.subr.mxu0 0.0
        %350 = vmatpush1.msra.mxu0 %v293
        %351 = vmatprep.subr.mxu0 0.0
        %352 = vmatpush1.msra.mxu0 %v292
        %353 = vmatprep.subr.mxu0 0.0
        %354 = vmatpush1.msra.mxu0 %v291
        %355 = vmatprep.subr.mxu0 0.0
        %356 = vmatpush2.msra.mxu0 %v322
        %357 = vmatprep.subr.mxu0 0.0
        %358 = vmatpush2.msra.mxu0 %v321
        %359 = vmatprep.subr.mxu0 0.0
        %360 = vmatpush2.msra.mxu0 %v320
        %361 = vmatprep.subr.mxu0 0.0
        %362 = vmatpush2.msra.mxu0 %v319
        %363 = vmatprep.subr.mxu0 0.0
        %364 = vmatpush2.msra.mxu0 %v318
        %365 = vmatprep.subr.mxu0 0.0
        %366 = vmatpush2.msra.mxu0 %v317
        %367 = vmatprep.subr.mxu0 0.0
        %368 = vmatpush2.msra.mxu0 %v316
        %369 = vmatprep.subr.mxu0 0.0
        %370 = vmatpush2.msra.mxu0 %v315
        %371 = vmatprep.subr.mxu0 0.0
        %372 = vmatpush2.msra.mxu0 %v314
        %373 = vmatprep.subr.mxu0 0.0
        %374 = vmatpush2.msra.mxu0 %v313
        %375 = vmatprep.subr.mxu0 0.0
        %376 = vmatpush2.msra.mxu0 %v312
        %377 = vmatprep.subr.mxu0 0.0
        %378 = vmatpush2.msra.mxu0 %v311
        %379 = vmatprep.subr.mxu0 0.0
        %380 = vmatpush2.msra.mxu0 %v310
        %381 = vmatprep.subr.mxu0 0.0
        %382 = vmatpush2.msra.mxu0 %v309
        %383 = vmatprep.subr.mxu0 0.0
        %384 = vmatpush2.msra.mxu0 %v308
        %385 = vmatprep.subr.mxu0 0.0
        %386 = vmatpush2.msra.mxu0 %v307
        %387 = vmatprep.mubr.f32.mxu0 %v284
        %388 = vmatmul.mubr.f32.gmra.mxu0 %v283
        %v389 = vpop.f32.mrf.mxu0
        %v390 = vadd.f32 0.0, %v389
        %v391 = vpop.f32.mrf.mxu0
        %392 = vmatprep.mubr.f32.mxu0 %v286
        %393 = vmatmul.mubr.f32.gmra.mxu0 %v285
        %v394 = vpop.f32.mrf.mxu0
        %v395 = vadd.f32 0.0, %v394
        %v396 = vpop.f32.mrf.mxu0
        %397 = vmatprep.mubr.f32.mxu0 %v288
        %398 = vmatmul.mubr.f32.gmra.mxu0 %v287
        %v399 = vpop.f32.mrf.mxu0
        %v400 = vadd.f32 0.0, %v399
        %v401 = vpop.f32.mrf.mxu0
        %402 = vmatprep.mubr.f32.mxu0 %v290
        %403 = vmatmul.mubr.f32.gmra.mxu0 %v289
        %v404 = vpop.f32.mrf.mxu0
        %v405 = vadd.f32 0.0, %v404
        %v406 = vpop.f32.mrf.mxu0
        %407 = vdwg.mxu0
        %v408 = vld [vmem:[%s1] sm:$0xff]
        %v409 = vld [vmem:[%s3] sm:$0xff]
        %vm410 = vcmask 261120
        %v412 = vsel %vm410, %v408, 0
        %414 = vmatprep.subr.mxu0 0.0
        %415 = vmatpush1.msra.mxu0 0.0
        %416 = vmatprep.subr.mxu0 0.0
        %417 = vmatpush1.msra.mxu0 0.0
        %418 = vmatprep.subr.mxu0 0.0
        %419 = vmatpush1.msra.mxu0 0.0
        %420 = vmatprep.subr.mxu0 0.0
        %421 = vmatpush1.msra.mxu0 0.0
        %422 = vmatprep.subr.mxu0 0.0
        %423 = vmatpush1.msra.mxu0 0.0
        %424 = vmatprep.subr.mxu0 0.0
        %425 = vmatpush1.msra.mxu0 0.0
        %426 = vmatprep.subr.mxu0 0.0
        %427 = vmatpush1.msra.mxu0 0.0
        %428 = vmatprep.subr.mxu0 0.0
        %429 = vmatpush1.msra.mxu0 0.0
        %430 = vmatprep.subr.mxu0 0.0
        %431 = vmatpush1.msra.mxu0 0.0
        %432 = vmatprep.subr.mxu0 0.0
        %433 = vmatpush1.msra.mxu0 0.0
        %434 = vmatprep.subr.mxu0 0.0
        %435 = vmatpush1.msra.mxu0 0.0
        %436 = vmatprep.subr.mxu0 0.0
        %437 = vmatpush1.msra.mxu0 0.0
        %438 = vmatprep.subr.mxu0 0.0
        %439 = vmatpush1.msra.mxu0 %v405
        %440 = vmatprep.subr.mxu0 0.0
        %441 = vmatpush1.msra.mxu0 %v400
        %442 = vmatprep.subr.mxu0 0.0
        %443 = vmatpush1.msra.mxu0 %v395
        %444 = vmatprep.subr.mxu0 0.0
        %445 = vmatpush1.msra.mxu0 %v390
        %446 = vmatprep.subr.mxu0 0.0
        %447 = vmatpush2.msra.mxu0 0.0
        %448 = vmatprep.subr.mxu0 0.0
        %449 = vmatpush2.msra.mxu0 0.0
        %450 = vmatprep.subr.mxu0 0.0
        %451 = vmatpush2.msra.mxu0 0.0
        %452 = vmatprep.subr.mxu0 0.0
        %453 = vmatpush2.msra.mxu0 0.0
        %454 = vmatprep.subr.mxu0 0.0
        %455 = vmatpush2.msra.mxu0 0.0
        %456 = vmatprep.subr.mxu0 0.0
        %457 = vmatpush2.msra.mxu0 0.0
        %458 = vmatprep.subr.mxu0 0.0
        %459 = vmatpush2.msra.mxu0 0.0
        %460 = vmatprep.subr.mxu0 0.0
        %461 = vmatpush2.msra.mxu0 0.0
        %462 = vmatprep.subr.mxu0 0.0
        %463 = vmatpush2.msra.mxu0 0.0
        %464 = vmatprep.subr.mxu0 0.0
        %465 = vmatpush2.msra.mxu0 0.0
        %466 = vmatprep.subr.mxu0 0.0
        %467 = vmatpush2.msra.mxu0 0.0
        %468 = vmatprep.subr.mxu0 0.0
        %469 = vmatpush2.msra.mxu0 0.0
        %470 = vmatprep.subr.mxu0 0.0
        %471 = vmatpush2.msra.mxu0 0.0
        %472 = vmatprep.subr.mxu0 0.0
        %473 = vmatpush2.msra.mxu0 0.0
        %474 = vmatprep.subr.mxu0 0.0
        %475 = vmatpush2.msra.mxu0 0.0
        %476 = vmatprep.subr.mxu0 0.0
        %477 = vmatpush2.msra.mxu0 0.0
        %478 = vmatprep.mubr.f32.mxu0 0.0
        %479 = vmatmul.mubr.f32.gmra.mxu0 %v412
        %v480 = vpop.f32.mrf.mxu0
        %v481 = vadd.f32 %v409, %v480
        %v482 = vpop.f32.mrf.mxu0
        %483 = vdwg.mxu0
        %v484 = vmax.f32 %v481, 0.0
        %v485 = vld [vmem:[%s2] sm:$0xff]
        %v486 = vld [vmem:[%s2 + $0x8] sm:$0xff]
        %v487 = vld [vmem:[%s2 + $0x10] sm:$0xff]
        %v488 = vld [vmem:[%s2 + $0x18] sm:$0xff]
        %v489 = vld [vmem:[%s2 + $0x20] sm:$0xff]
        %v490 = vld [vmem:[%s2 + $0x28] sm:$0xff]
        %v491 = vld [vmem:[%s2 + $0x30] sm:$0xff]
        %v492 = vld [vmem:[%s2 + $0x38] sm:$0xff]
        %vm493 = vcmask 64512
        %v495 = vsel %vm493, %v485, 0
        %v498 = vsel %vm493, %v486, 0
        %v501 = vsel %vm493, %v487, 0
        %v504 = vsel %vm493, %v488, 0
        %v507 = vsel %vm493, %v489, 0
        %v510 = vsel %vm493, %v490, 0
        %v513 = vsel %vm493, %v491, 0
        %v516 = vsel %vm493, %v492, 0
        %518 = vmatprep.subr.mxu0 0.0
        %519 = vmatpush1.msra.mxu0 0.0
        %520 = vmatprep.subr.mxu0 0.0
        %521 = vmatpush1.msra.mxu0 0.0
        %522 = vmatprep.subr.mxu0 0.0
        %523 = vmatpush1.msra.mxu0 0.0
        %524 = vmatprep.subr.mxu0 0.0
        %525 = vmatpush1.msra.mxu0 0.0
        %526 = vmatprep.subr.mxu0 0.0
        %527 = vmatpush1.msra.mxu0 0.0
        %528 = vmatprep.subr.mxu0 0.0
        %529 = vmatpush1.msra.mxu0 0.0
        %530 = vmatprep.subr.mxu0 0.0
        %531 = vmatpush1.msra.mxu0 0.0
        %532 = vmatprep.subr.mxu0 0.0
        %533 = vmatpush1.msra.mxu0 0.0
        %534 = vmatprep.subr.mxu0 0.0
        %535 = vmatpush1.msra.mxu0 0.0
        %536 = vmatprep.subr.mxu0 0.0
        %537 = vmatpush1.msra.mxu0 0.0
        %538 = vmatprep.subr.mxu0 0.0
        %539 = vmatpush1.msra.mxu0 0.0
        %540 = vmatprep.subr.mxu0 0.0
        %541 = vmatpush1.msra.mxu0 0.0
        %542 = vmatprep.subr.mxu0 0.0
        %543 = vmatpush1.msra.mxu0 0.0
        %544 = vmatprep.subr.mxu0 0.0
        %545 = vmatpush1.msra.mxu0 0.0
        %546 = vmatprep.subr.mxu0 0.0
        %547 = vmatpush1.msra.mxu0 0.0
        %548 = vmatprep.subr.mxu0 0.0
        %549 = vmatpush1.msra.mxu0 %v484
        %550 = vmatprep.subr.mxu0 0.0
        %551 = vmatpush2.msra.mxu0 0.0
        %552 = vmatprep.subr.mxu0 0.0
        %553 = vmatpush2.msra.mxu0 0.0
        %554 = vmatprep.subr.mxu0 0.0
        %555 = vmatpush2.msra.mxu0 0.0
        %556 = vmatprep.subr.mxu0 0.0
        %557 = vmatpush2.msra.mxu0 0.0
        %558 = vmatprep.subr.mxu0 0.0
        %559 = vmatpush2.msra.mxu0 0.0
        %560 = vmatprep.subr.mxu0 0.0
        %561 = vmatpush2.msra.mxu0 0.0
        %562 = vmatprep.subr.mxu0 0.0
        %563 = vmatpush2.msra.mxu0 0.0
        %564 = vmatprep.subr.mxu0 0.0
        %565 = vmatpush2.msra.mxu0 0.0
        %566 = vmatprep.subr.mxu0 0.0
        %567 = vmatpush2.msra.mxu0 0.0
        %568 = vmatprep.subr.mxu0 0.0
        %569 = vmatpush2.msra.mxu0 0.0
        %570 = vmatprep.subr.mxu0 0.0
        %571 = vmatpush2.msra.mxu0 0.0
        %572 = vmatprep.subr.mxu0 0.0
        %573 = vmatpush2.msra.mxu0 0.0
        %574 = vmatprep.subr.mxu0 0.0
        %575 = vmatpush2.msra.mxu0 0.0
        %576 = vmatprep.subr.mxu0 0.0
        %577 = vmatpush2.msra.mxu0 0.0
        %578 = vmatprep.subr.mxu0 0.0
        %579 = vmatpush2.msra.mxu0 0.0
        %580 = vmatprep.subr.mxu0 0.0
        %581 = vmatpush2.msra.mxu0 0.0
        %582 = vmatprep.mubr.f32.mxu0 0.0
        %583 = vmatmul.mubr.f32.gmra.mxu0 %v495
        %v584 = vpop.f32.mrf.mxu0
        %v585 = vadd.f32 0.0, %v584
        %v586 = vpop.f32.mrf.mxu0
        %587 = vmatprep.mubr.f32.mxu0 0.0
        %588 = vmatmul.mubr.f32.gmra.mxu0 %v498
        %v589 = vpop.f32.mrf.mxu0
        %v590 = vadd.f32 0.0, %v589
        %v591 = vpop.f32.mrf.mxu0
        %592 = vmatprep.mubr.f32.mxu0 0.0
        %593 = vmatmul.mubr.f32.gmra.mxu0 %v501
        %v594 = vpop.f32.mrf.mxu0
        %v595 = vadd.f32 0.0, %v594
        %v596 = vpop.f32.mrf.mxu0
        %597 = vmatprep.mubr.f32.mxu0 0.0
        %598 = vmatmul.mubr.f32.gmra.mxu0 %v504
        %v599 = vpop.f32.mrf.mxu0
        %v600 = vadd.f32 0.0, %v599
        %v601 = vpop.f32.mrf.mxu0
        %602 = vmatprep.mubr.f32.mxu0 0.0
        %603 = vmatmul.mubr.f32.gmra.mxu0 %v507
        %v604 = vpop.f32.mrf.mxu0
        %v605 = vadd.f32 0.0, %v604
        %v606 = vpop.f32.mrf.mxu0
        %607 = vmatprep.mubr.f32.mxu0 0.0
        %608 = vmatmul.mubr.f32.gmra.mxu0 %v510
        %v609 = vpop.f32.mrf.mxu0
        %v610 = vadd.f32 0.0, %v609
        %v611 = vpop.f32.mrf.mxu0
        %612 = vmatprep.mubr.f32.mxu0 0.0
        %613 = vmatmul.mubr.f32.gmra.mxu0 %v513
        %v614 = vpop.f32.mrf.mxu0
        %v615 = vadd.f32 0.0, %v614
        %v616 = vpop.f32.mrf.mxu0
        %617 = vmatprep.mubr.f32.mxu0 0.0
        %618 = vmatmul.mubr.f32.gmra.mxu0 %v516
        %v619 = vpop.f32.mrf.mxu0
        %v620 = vadd.f32 0.0, %v619
        %v621 = vpop.f32.mrf.mxu0
        %622 = vdwg.mxu0
        %v623 = vxor.u32 %v585, 2147483648
        %v624 = vxor.u32 %v590, 2147483648
        %v625 = vxor.u32 %v595, 2147483648
        %v626 = vxor.u32 %v600, 2147483648
        %v627 = vxor.u32 %v605, 2147483648
        %v628 = vxor.u32 %v610, 2147483648
        %v629 = vxor.u32 %v615, 2147483648
        %v630 = vxor.u32 %v620, 2147483648
        %v631 = vmul.f32 %v623, 1.442695
        %v632 = vpow.pop %v631
        %v633 = vmul.f32 %v624, 1.442695
        %v634 = vpow.pop %v633
        %v635 = vmul.f32 %v625, 1.442695
        %v636 = vpow.pop %v635
        %v637 = vmul.f32 %v626, 1.442695
        %v638 = vpow.pop %v637
        %v639 = vmul.f32 %v627, 1.442695
        %v640 = vpow.pop %v639
        %v641 = vmul.f32 %v628, 1.442695
        %v642 = vpow.pop %v641
        %v643 = vmul.f32 %v629, 1.442695
        %v644 = vpow.pop %v643
        %v645 = vmul.f32 %v630, 1.442695
        %v646 = vpow.pop %v645
        %v647 = vadd.f32 %v632, 1.0
        %v648 = vadd.f32 %v634, 1.0
        %v649 = vadd.f32 %v636, 1.0
        %v650 = vadd.f32 %v638, 1.0
        %v651 = vadd.f32 %v640, 1.0
        %v652 = vadd.f32 %v642, 1.0
        %v653 = vadd.f32 %v644, 1.0
        %v654 = vadd.f32 %v646, 1.0
        %v655 = vrcp.pop %v647
        %v656 = vmul.f32 1.0, %v655
        %v657 = vrcp.pop %v648
        %v658 = vmul.f32 1.0, %v657
        %v659 = vrcp.pop %v649
        %v660 = vmul.f32 1.0, %v659
        %v661 = vrcp.pop %v650
        %v662 = vmul.f32 1.0, %v661
        %v663 = vrcp.pop %v651
        %v664 = vmul.f32 1.0, %v663
        %v665 = vrcp.pop %v652
        %v666 = vmul.f32 1.0, %v665
        %v667 = vrcp.pop %v653
        %v668 = vmul.f32 1.0, %v667
        %v669 = vrcp.pop %v654
        %v670 = vmul.f32 1.0, %v669
        %v671 = vld [vmem:[%s5] sm:$0xff]
        %v672 = vld [vmem:[%s5 + $0x8] sm:$0xff]
        %v673 = vld [vmem:[%s5 + $0x10] sm:$0xff]
        %v674 = vld [vmem:[%s5 + $0x18] sm:$0xff]
        %v675 = vld [vmem:[%s5 + $0x20] sm:$0xff]
        %v676 = vld [vmem:[%s5 + $0x28] sm:$0xff]
        %v677 = vld [vmem:[%s5 + $0x30] sm:$0xff]
        %v678 = vld [vmem:[%s5 + $0x38] sm:$0xff]
        %v680 = vsel %vm410, %v656, 0
        %v683 = vsel %vm410, %v658, 0
        %v686 = vsel %vm410, %v660, 0
        %v689 = vsel %vm410, %v662, 0
        %691 = vmatprep.subr.mxu0 0.0
        %692 = vmatpush1.msra.mxu0 0.0
        %693 = vmatprep.subr.mxu0 0.0
        %694 = vmatpush1.msra.mxu0 0.0
        %695 = vmatprep.subr.mxu0 0.0
        %696 = vmatpush1.msra.mxu0 0.0
        %697 = vmatprep.subr.mxu0 0.0
        %698 = vmatpush1.msra.mxu0 0.0
        %699 = vmatprep.subr.mxu0 0.0
        %700 = vmatpush1.msra.mxu0 0.0
        %701 = vmatprep.subr.mxu0 0.0
        %702 = vmatpush1.msra.mxu0 0.0
        %703 = vmatprep.subr.mxu0 0.0
        %704 = vmatpush1.msra.mxu0 0.0
        %705 = vmatprep.subr.mxu0 0.0
        %706 = vmatpush1.msra.mxu0 0.0
        %707 = vmatprep.subr.mxu0 0.0
        %708 = vmatpush1.msra.mxu0 0.0
        %709 = vmatprep.subr.mxu0 0.0
        %710 = vmatpush1.msra.mxu0 0.0
        %711 = vmatprep.subr.mxu0 0.0
        %712 = vmatpush1.msra.mxu0 0.0
        %713 = vmatprep.subr.mxu0 0.0
        %714 = vmatpush1.msra.mxu0 0.0
        %715 = vmatprep.subr.mxu0 %v678
        %716 = vmatpush1.msra.mxu0 %v677
        %717 = vmatprep.subr.mxu0 %v676
        %718 = vmatpush1.msra.mxu0 %v675
        %719 = vmatprep.subr.mxu0 %v674
        %720 = vmatpush1.msra.mxu0 %v673
        %721 = vmatprep.subr.mxu0 %v672
        %722 = vmatpush1.msra.mxu0 %v671
        %723 = vmatprep.subr.mxu0 0.0
        %724 = vmatpush2.msra.mxu0 0.0
        %725 = vmatprep.subr.mxu0 0.0
        %726 = vmatpush2.msra.mxu0 0.0
        %727 = vmatprep.subr.mxu0 0.0
        %728 = vmatpush2.msra.mxu0 0.0
        %729 = vmatprep.subr.mxu0 0.0
        %730 = vmatpush2.msra.mxu0 0.0
        %731 = vmatprep.subr.mxu0 0.0
        %732 = vmatpush2.msra.mxu0 0.0
        %733 = vmatprep.subr.mxu0 0.0
        %734 = vmatpush2.msra.mxu0 0.0
        %735 = vmatprep.subr.mxu0 0.0
        %736 = vmatpush2.msra.mxu0 0.0
        %737 = vmatprep.subr.mxu0 0.0
        %738 = vmatpush2.msra.mxu0 0.0
        %739 = vmatprep.subr.mxu0 0.0
        %740 = vmatpush2.msra.mxu0 0.0
        %741 = vmatprep.subr.mxu0 0.0
        %742 = vmatpush2.msra.mxu0 0.0
        %743 = vmatprep.subr.mxu0 0.0
        %744 = vmatpush2.msra.mxu0 0.0
        %745 = vmatprep.subr.mxu0 0.0
        %746 = vmatpush2.msra.mxu0 0.0
        %747 = vmatprep.subr.mxu0 0.0
        %748 = vmatpush2.msra.mxu0 0.0
        %749 = vmatprep.subr.mxu0 0.0
        %750 = vmatpush2.msra.mxu0 0.0
        %751 = vmatprep.subr.mxu0 0.0
        %752 = vmatpush2.msra.mxu0 0.0
        %753 = vmatprep.subr.mxu0 0.0
        %754 = vmatpush2.msra.mxu0 0.0
        %755 = vmatprep.mubr.f32.mxu0 0.0
        %756 = vmatmul.mubr.f32.gmra.mxu0 %v680
        %v757 = vpop.f32.mrf.mxu0
        %v758 = vadd.f32 0.0, %v757
        %v759 = vpop.f32.mrf.mxu0
        %v760 = vadd.f32 0.0, %v759
        %761 = vmatprep.mubr.f32.mxu0 0.0
        %762 = vmatmul.mubr.f32.gmra.mxu0 %v683
        %v763 = vpop.f32.mrf.mxu0
        %v764 = vadd.f32 0.0, %v763
        %v765 = vpop.f32.mrf.mxu0
        %v766 = vadd.f32 0.0, %v765
        %767 = vmatprep.mubr.f32.mxu0 0.0
        %768 = vmatmul.mubr.f32.gmra.mxu0 %v686
        %v769 = vpop.f32.mrf.mxu0
        %v770 = vadd.f32 0.0, %v769
        %v771 = vpop.f32.mrf.mxu0
        %v772 = vadd.f32 0.0, %v771
        %773 = vmatprep.mubr.f32.mxu0 0.0
        %774 = vmatmul.mubr.f32.gmra.mxu0 %v689
        %v775 = vpop.f32.mrf.mxu0
        %v776 = vadd.f32 0.0, %v775
        %v777 = vpop.f32.mrf.mxu0
        %v778 = vadd.f32 0.0, %v777
        %779 = vdwg.mxu0
        %v780 = vld [vmem:[%s6] sm:$0xff]
        %v781 = vld [vmem:[%s6 + $0x8] sm:$0xff]
        %v782 = vld [vmem:[%s6 + $0x10] sm:$0xff]
        %v783 = vld [vmem:[%s6 + $0x18] sm:$0xff]
        %v784 = vld [vmem:[%s6 + $0x20] sm:$0xff]
        %v785 = vld [vmem:[%s6 + $0x28] sm:$0xff]
        %v786 = vld [vmem:[%s6 + $0x30] sm:$0xff]
        %v787 = vld [vmem:[%s6 + $0x38] sm:$0xff]
        %v789 = vsel %vm410, %v664, 0
        %v792 = vsel %vm410, %v666, 0
        %v795 = vsel %vm410, %v668, 0
        %v798 = vsel %vm410, %v670, 0
        %800 = vmatprep.subr.mxu0 0.0
        %801 = vmatpush1.msra.mxu0 0.0
        %802 = vmatprep.subr.mxu0 0.0
        %803 = vmatpush1.msra.mxu0 0.0
        %804 = vmatprep.subr.mxu0 0.0
        %805 = vmatpush1.msra.mxu0 0.0
        %806 = vmatprep.subr.mxu0 0.0
        %807 = vmatpush1.msra.mxu0 0.0
        %808 = vmatprep.subr.mxu0 0.0
        %809 = vmatpush1.msra.mxu0 0.0
        %810 = vmatprep.subr.mxu0 0.0
        %811 = vmatpush1.msra.mxu0 0.0
        %812 = vmatprep.subr.mxu0 0.0
        %813 = vmatpush1.msra.mxu0 0.0
        %814 = vmatprep.subr.mxu0 0.0
        %815 = vmatpush1.msra.mxu0 0.0
        %816 = vmatprep.subr.mxu0 0.0
        %817 = vmatpush1.msra.mxu0 0.0
        %818 = vmatprep.subr.mxu0 0.0
        %819 = vmatpush1.msra.mxu0 0.0
        %820 = vmatprep.subr.mxu0 0.0
        %821 = vmatpush1.msra.mxu0 0.0
        %822 = vmatprep.subr.mxu0 0.0
        %823 = vmatpush1.msra.mxu0 0.0
        %824 = vmatprep.subr.mxu0 %v787
        %825 = vmatpush1.msra.mxu0 %v786
        %826 = vmatprep.subr.mxu0 %v785
        %827 = vmatpush1.msra.mxu0 %v784
        %828 = vmatprep.subr.mxu0 %v783
        %829 = vmatpush1.msra.mxu0 %v782
        %830 = vmatprep.subr.mxu0 %v781
        %831 = vmatpush1.msra.mxu0 %v780
        %832 = vmatprep.subr.mxu0 0.0
        %833 = vmatpush2.msra.mxu0 0.0
        %834 = vmatprep.subr.mxu0 0.0
        %835 = vmatpush2.msra.mxu0 0.0
        %836 = vmatprep.subr.mxu0 0.0
        %837 = vmatpush2.msra.mxu0 0.0
        %838 = vmatprep.subr.mxu0 0.0
        %839 = vmatpush2.msra.mxu0 0.0
        %840 = vmatprep.subr.mxu0 0.0
        %841 = vmatpush2.msra.mxu0 0.0
        %842 = vmatprep.subr.mxu0 0.0
        %843 = vmatpush2.msra.mxu0 0.0
        %844 = vmatprep.subr.mxu0 0.0
        %845 = vmatpush2.msra.mxu0 0.0
        %846 = vmatprep.subr.mxu0 0.0
        %847 = vmatpush2.msra.mxu0 0.0
        %848 = vmatprep.subr.mxu0 0.0
        %849 = vmatpush2.msra.mxu0 0.0
        %850 = vmatprep.subr.mxu0 0.0
        %851 = vmatpush2.msra.mxu0 0.0
        %852 = vmatprep.subr.mxu0 0.0
        %853 = vmatpush2.msra.mxu0 0.0
        %854 = vmatprep.subr.mxu0 0.0
        %855 = vmatpush2.msra.mxu0 0.0
        %856 = vmatprep.subr.mxu0 0.0
        %857 = vmatpush2.msra.mxu0 0.0
        %858 = vmatprep.subr.mxu0 0.0
        %859 = vmatpush2.msra.mxu0 0.0
        %860 = vmatprep.subr.mxu0 0.0
        %861 = vmatpush2.msra.mxu0 0.0
        %862 = vmatprep.subr.mxu0 0.0
        %863 = vmatpush2.msra.mxu0 0.0
        %864 = vmatprep.mubr.f32.mxu0 0.0
        %865 = vmatmul.mubr.f32.gmra.mxu0 %v789
        %v866 = vpop.f32.mrf.mxu0
        %v867 = vadd.f32 0.0, %v866
        %v868 = vpop.f32.mrf.mxu0
        %v869 = vadd.f32 0.0, %v868
        %870 = vmatprep.mubr.f32.mxu0 0.0
        %871 = vmatmul.mubr.f32.gmra.mxu0 %v792
        %v872 = vpop.f32.mrf.mxu0
        %v873 = vadd.f32 0.0, %v872
        %v874 = vpop.f32.mrf.mxu0
        %v875 = vadd.f32 0.0, %v874
        %876 = vmatprep.mubr.f32.mxu0 0.0
        %877 = vmatmul.mubr.f32.gmra.mxu0 %v795
        %v878 = vpop.f32.mrf.mxu0
        %v879 = vadd.f32 0.0, %v878
        %v880 = vpop.f32.mrf.mxu0
        %v881 = vadd.f32 0.0, %v880
        %882 = vmatprep.mubr.f32.mxu0 0.0
        %883 = vmatmul.mubr.f32.gmra.mxu0 %v798
        %v884 = vpop.f32.mrf.mxu0
        %v885 = vadd.f32 0.0, %v884
        %v886 = vpop.f32.mrf.mxu0
        %v887 = vadd.f32 0.0, %v886
        %888 = vdwg.mxu0
        %v889 = vmul.f32 %v758, %v867
        %v890 = vmul.f32 %v760, %v869
        %v891 = vmul.f32 %v764, %v873
        %v892 = vmul.f32 %v766, %v875
        %v893 = vmul.f32 %v770, %v879
        %v894 = vmul.f32 %v772, %v881
        %v895 = vmul.f32 %v776, %v885
        %v896 = vmul.f32 %v778, %v887
        %v897 = vmul.f32 %v283, %v889
        %v898 = vmul.f32 %v284, %v890
        %v899 = vmul.f32 %v285, %v891
        %v900 = vmul.f32 %v286, %v892
        %v901 = vmul.f32 %v287, %v893
        %v902 = vmul.f32 %v288, %v894
        %v903 = vmul.f32 %v289, %v895
        %v904 = vmul.f32 %v290, %v896
        %905 = vst [vmem:[%s274] sm:$0xff] %v897
        %906 = vst [vmem:[%s274 + $0x8] sm:$0xff] %v898
        %907 = vst [vmem:[%s274 + $0x10] sm:$0xff] %v899
        %908 = vst [vmem:[%s274 + $0x18] sm:$0xff] %v900
        %909 = vst [vmem:[%s274 + $0x20] sm:$0xff] %v901
        %910 = vst [vmem:[%s274 + $0x28] sm:$0xff] %v902
        %911 = vst [vmem:[%s274 + $0x30] sm:$0xff] %v903
        %912 = vst [vmem:[%s274 + $0x38] sm:$0xff] %v904
        %s913 = sand.u32 %s181, 1
        %s914 = scalar_lea.sflag [#allocation3], %s913
        %s915 = sand.u32 %s181, 1
        %s916 = smul.addr %s915, 64
        %s917 = scalar_lea.vmem [#allocation2], %s916
        // Predicated region
        $region49: #{tpu_custom_call.1} parent=47 // pred_check
          %p918 = pneg %p191
        $region50: #{tpu_custom_call.1} parent=47 // pred_check_branch
          %920 = sbr.rel (%p918) target = $region52
        $region51: #{tpu_custom_call.1} parent=47 // pred_region
          %s921 = smul.u32 4, %s21
          %s923 = ssub.s32 1024, 1024
          %924 = vsyncadd %s914, %s923
          %s925 = smul.addr %s921, 2
          %s926 = smul.addr %s925, 128
          %s927 = scalar_lea.hbm %s7, %s926
          %s928 = sshll.u32 %s917, 4
          %s929 = int_to_ptr.vmem [resolvable:$true] %s928
          %934 = dma.vmem_to_hbm [thread:$0]  %s929, 1024, %s927, %s914, 256, 256, 16
        $region52: #{tpu_custom_call.1} parent=47 // pred_fallthru
          _
      $region48: #{tpu_custom_call.1} parent=5 // pred_fallthru
        _
      %p935 = scmp.le.s32.totalorder 2, %s16
      // Predicated region
      $region53: #{tpu_custom_call.1} parent=5 // pred_check
        %p936 = pneg %p935
      $region54: #{tpu_custom_call.1} parent=5 // pred_check_branch
        %938 = sbr.rel (%p936) target = $region56
      $region55: #{tpu_custom_call.1} parent=5 // pred_region
        %s939 = ssub.s32 %s16, 2
        // Predicated region
        $region57: #{tpu_custom_call.1} parent=55 // pred_check
          %p940 = pneg %p197
        $region58: #{tpu_custom_call.1} parent=55 // pred_check_branch
          %942 = sbr.rel (%p940) target = $region60
        $region59: #{tpu_custom_call.1} parent=55 // pred_region
          %s943 = sand.u32 %s182, 1
          %s944 = scalar_lea.sflag [#allocation3], %s943
          %s945 = sand.u32 %s182, 1
          %s946 = smul.addr %s945, 64
          %s947 = scalar_lea.vmem [#allocation2], %s946
          %948 = dma.done %s944, 1024
        $region60: #{tpu_custom_call.1} parent=55 // pred_fallthru
          _
      $region56: #{tpu_custom_call.1} parent=5 // pred_fallthru
        _
    $region6: #{tpu_custom_call.1} parent=1 // loop_footer
      %s20 = sadd.s32 1, %s16
    $region7: #{tpu_custom_call.1} parent=1 // loop_footer_branch
      %15 = sbr.rel target = $region3
    $region8: #{tpu_custom_call.1} parent=1 // loop_exit
      _
    %949 = vsyncpa [#allocation3], 1
    %s950 = scalar_lea.sflag [#allocation3], 1
    %951 = vsyncpa %s950, 1

// kernel: tpu_custom_call.1
$region0: #{tpu_custom_call.1}
  #allocation0 [shape = 'u32[]', space=smem, size = 0x4, offset = 0x4, fixed_abs, tag = 'smem constant byte address 0x4 - core index']
  #allocation1 [shape = 'u32[144,128]{1,0:T(1,128)}', space=vmem, size = 0x12000, scoped, tag = 'internal scratch']
  %s0 = inlined_call_operand.vmem [shape: f32[64,256], index: 0, kind: input, shape index: {}]
  %s1 = inlined_call_operand.vmem [shape: f32[8,32], index: 1, kind: input, shape index: {}]
  %s2 = inlined_call_operand.vmem [shape: f32[64,8], index: 2, kind: input, shape index: {}]
  %s3 = inlined_call_operand.vmem [shape: f32[8,32], index: 3, kind: input, shape index: {}]
  %s4 = inlined_call_operand.vmem [shape: f32[256,32], index: 4, kind: input, shape index: {}]
  %s5 = inlined_call_operand.vmem [shape: f32[32,256], index: 5, kind: input, shape index: {}]
  %s6 = inlined_call_operand.vmem [shape: f32[32,256], index: 6, kind: input, shape index: {}]
  %s7 = inlined_call_operand.hbm [shape: f32[64,256], index: 7, kind: output, shape index: {}]
  %s8 = sld [smem:[#allocation0]]
  $region61: #{tpu_custom_call.1} parent=0
    _
  %s10 = ssub.s32 1, %s8
  %s11 = scalar_select 0, %s10, %s8
  $region1: #{tpu_custom_call.1} parent=0
    #allocation2 [shape = 'u8[65536]{0}', space=vmem, size = 0x10000, scoped, tag = 'output window, operand 0']
    #allocation3 [shape = 's32[2]{0}', space=sflag, size = 0x8, scoped, tag = 'scoped memory for tpu_custom_call.1']
    %12 = vsyncpa [#allocation3], 0
    %s13 = scalar_lea.sflag [#allocation3], 1
    %14 = vsyncpa %s13, 0
    loop: start=0, step=1, limit=4
    $region2: #{tpu_custom_call.1} parent=1 // loop_pre_header
      _
    $region3: #{tpu_custom_call.1} parent=1 // loop_header
      %s16 = sphi 0, %s20
      %p17 = scmp.ge.s32.totalorder %s16, 4
      %s26 = sphi 0, %s28
      %s29 = sphi 0, %s26
      %s30 = sphi 0, %s29
      %s46 = sphi 0, %s30
      %s50 = sphi 0, %s50
      %s52 = sphi 0, %s50
      %s53 = sphi 0, %s52
      %s67 = sphi 0, %s53
      %s71 = sphi 0, %s71
      %s73 = sphi 0, %s71
      %s74 = sphi 0, %s73
      %s88 = sphi 0, %s74
      %s92 = sphi 0, %s92
      %s94 = sphi 0, %s92
      %s95 = sphi 0, %s94
      %s109 = sphi 0, %s95
      %s113 = sphi 0, %s113
      %s115 = sphi 0, %s113
      %s116 = sphi 0, %s115
      %s130 = sphi 0, %s116
      %s134 = sphi 0, %s134
      %s136 = sphi 0, %s134
      %s137 = sphi 0, %s136
      %s151 = sphi 0, %s137
      %s155 = sphi 0, %s155
      %s157 = sphi 0, %s155
      %s158 = sphi 0, %s157
      %s172 = sphi 0, %s158
      %s178 = sphi 0, %s180
      %s181 = sphi 0, %s178
      %s182 = sphi 0, %s181
      %s198 = sphi 0, %s182
    $region4: #{tpu_custom_call.1} parent=1 // loop_header_branch
      %19 = sbr.rel (%p17) target = $region8
    $region5: #{tpu_custom_call.1} parent=1 // loop_body
      %s21 = ssub.s32 %s16, 1
      %s22 = ssub.s32 %s16, 2
      %s23 = sadd.s32 %s16, 1
      %s24 = ssub.s32 %s16, %s23
      %p25 = scmp.eq.s32.totalorder %s24, 0
      %s27 = sadd.s32 %s26, 1
      %s28 = scalar_select %p25, %s26, %s27
      %p31 = pneg %p25
      %p32 = scmp.eq.s32.totalorder %s16, 1
      %p33 = por %p31, %p32
      %p34 = scmp.ne.s32.totalorder %s26, %s29
      %p35 = scmp.eq.s32.totalorder %s16, 0
      %p36 = por %p34, %p35
      %p37 = scmp.ne.s32.totalorder %s26, %s29
      %p38 = scmp.eq.s32.totalorder %s21, 1
      %p39 = por %p37, %p38
      %p40 = scmp.ne.s32.totalorder %s29, %s30
      %p41 = scmp.eq.s32.totalorder %s21, 0
      %p42 = por %p40, %p41
      %p43 = scmp.ne.s32.totalorder %s29, %s30
      %p44 = scmp.eq.s32.totalorder %s22, 1
      %p45 = por %p43, %p44
      %p47 = scmp.ne.s32.totalorder %s30, %s46
      %p48 = scmp.eq.s32.totalorder %s22, 0
      %p49 = por %p47, %p48
      %s51 = sadd.s32 %s50, 1
      %p54 = scmp.eq.s32.totalorder %s16, 1
      %p55 = scmp.ne.s32.totalorder %s50, %s52
      %p56 = scmp.eq.s32.totalorder %s16, 0
      %p57 = por %p55, %p56
      %p58 = scmp.ne.s32.totalorder %s50, %s52
      %p59 = scmp.eq.s32.totalorder %s21, 1
      %p60 = por %p58, %p59
      %p61 = scmp.ne.s32.totalorder %s52, %s53
      %p62 = scmp.eq.s32.totalorder %s21, 0
      %p63 = por %p61, %p62
      %p64 = scmp.ne.s32.totalorder %s52, %s53
      %p65 = scmp.eq.s32.totalorder %s22, 1
      %p66 = por %p64, %p65
      %p68 = scmp.ne.s32.totalorder %s53, %s67
      %p69 = scmp.eq.s32.totalorder %s22, 0
      %p70 = por %p68, %p69
      %s72 = sadd.s32 %s71, 1
      %p75 = scmp.eq.s32.totalorder %s16, 1
      %p76 = scmp.ne.s32.totalorder %s71, %s73
      %p77 = scmp.eq.s32.totalorder %s16, 0
      %p78 = por %p76, %p77
      %p79 = scmp.ne.s32.totalorder %s71, %s73
      %p80 = scmp.eq.s32.totalorder %s21, 1
      %p81 = por %p79, %p80
      %p82 = scmp.ne.s32.totalorder %s73, %s74
      %p83 = scmp.eq.s32.totalorder %s21, 0
      %p84 = por %p82, %p83
      %p85 = scmp.ne.s32.totalorder %s73, %s74
      %p86 = scmp.eq.s32.totalorder %s22, 1
      %p87 = por %p85, %p86
      %p89 = scmp.ne.s32.totalorder %s74, %s88
      %p90 = scmp.eq.s32.totalorder %s22, 0
      %p91 = por %p89, %p90
      %s93 = sadd.s32 %s92, 1
      %p96 = scmp.eq.s32.totalorder %s16, 1
      %p97 = scmp.ne.s32.totalorder %s92, %s94
      %p98 = scmp.eq.s32.totalorder %s16, 0
      %p99 = por %p97, %p98
      %p100 = scmp.ne.s32.totalorder %s92, %s94
      %p101 = scmp.eq.s32.totalorder %s21, 1
      %p102 = por %p100, %p101
      %p103 = scmp.ne.s32.totalorder %s94, %s95
      %p104 = scmp.eq.s32.totalorder %s21, 0
      %p105 = por %p103, %p104
      %p106 = scmp.ne.s32.totalorder %s94, %s95
      %p107 = scmp.eq.s32.totalorder %s22, 1
      %p108 = por %p106, %p107
      %p110 = scmp.ne.s32.totalorder %s95, %s109
      %p111 = scmp.eq.s32.totalorder %s22, 0
      %p112 = por %p110, %p111
      %s114 = sadd.s32 %s113, 1
      %p117 = scmp.eq.s32.totalorder %s16, 1
      %p118 = scmp.ne.s32.totalorder %s113, %s115
      %p119 = scmp.eq.s32.totalorder %s16, 0
      %p120 = por %p118, %p119
      %p121 = scmp.ne.s32.totalorder %s113, %s115
      %p122 = scmp.eq.s32.totalorder %s21, 1
      %p123 = por %p121, %p122
      %p124 = scmp.ne.s32.totalorder %s115, %s116
      %p125 = scmp.eq.s32.totalorder %s21, 0
      %p126 = por %p124, %p125
      %p127 = scmp.ne.s32.totalorder %s115, %s116
      %p128 = scmp.eq.s32.totalorder %s22, 1
      %p129 = por %p127, %p128
      %p131 = scmp.ne.s32.totalorder %s116, %s130
      %p132 = scmp.eq.s32.totalorder %s22, 0
      %p133 = por %p131, %p132
      %s135 = sadd.s32 %s134, 1
      %p138 = scmp.eq.s32.totalorder %s16, 1
      %p139 = scmp.ne.s32.totalorder %s134, %s136
      %p140 = scmp.eq.s32.totalorder %s16, 0
      %p141 = por %p139, %p140
      %p142 = scmp.ne.s32.totalorder %s134, %s136
      %p143 = scmp.eq.s32.totalorder %s21, 1
      %p144 = por %p142, %p143
      %p145 = scmp.ne.s32.totalorder %s136, %s137
      %p146 = scmp.eq.s32.totalorder %s21, 0
      %p147 = por %p145, %p146
      %p148 = scmp.ne.s32.totalorder %s136, %s137
      %p149 = scmp.eq.s32.totalorder %s22, 1
      %p150 = por %p148, %p149
      %p152 = scmp.ne.s32.totalorder %s137, %s151
      %p153 = scmp.eq.s32.totalorder %s22, 0
      %p154 = por %p152, %p153
      %s156 = sadd.s32 %s155, 1
      %p159 = scmp.eq.s32.totalorder %s16, 1
      %p160 = scmp.ne.s32.totalorder %s155, %s157
      %p161 = scmp.eq.s32.totalorder %s16, 0
      %p162 = por %p160, %p161
      %p163 = scmp.ne.s32.totalorder %s155, %s157
      %p164 = scmp.eq.s32.totalorder %s21, 1
      %p165 = por %p163, %p164
      %p166 = scmp.ne.s32.totalorder %s157, %s158
      %p167 = scmp.eq.s32.totalorder %s21, 0
      %p168 = por %p166, %p167
      %p169 = scmp.ne.s32.totalorder %s157, %s158
      %p170 = scmp.eq.s32.totalorder %s22, 1
      %p171 = por %p169, %p170
      %p173 = scmp.ne.s32.totalorder %s158, %s172
      %p174 = scmp.eq.s32.totalorder %s22, 0
      %p175 = por %p173, %p174
      %s176 = ssub.s32 %s16, %s23
      %p177 = scmp.eq.s32.totalorder %s176, 0
      %s179 = sadd.s32 %s178, 1
      %s180 = scalar_select %p177, %s178, %s179
      %p183 = pneg %p177
      %p184 = scmp.eq.s32.totalorder %s16, 1
      %p185 = por %p183, %p184
      %p186 = scmp.ne.s32.totalorder %s178, %s181
      %p187 = scmp.eq.s32.totalorder %s16, 0
      %p188 = por %p186, %p187
      %p189 = scmp.ne.s32.totalorder %s178, %s181
      %p190 = scmp.eq.s32.totalorder %s21, 1
      %p191 = por %p189, %p190
      %p192 = scmp.ne.s32.totalorder %s181, %s182
      %p193 = scmp.eq.s32.totalorder %s21, 0
      %p194 = por %p192, %p193
      %p195 = scmp.ne.s32.totalorder %s181, %s182
      %p196 = scmp.eq.s32.totalorder %s22, 1
      %p197 = por %p195, %p196
      %p199 = scmp.ne.s32.totalorder %s182, %s198
      %p200 = scmp.eq.s32.totalorder %s22, 0
      %p201 = por %p199, %p200
      %p202 = scmp.le.s32.totalorder 1, %s16
      %p203 = scmp.lt.s32.totalorder %s16, 3
      %p204 = pnand %p202, %p203
      %p205 = pneg %p204
      // Predicated region
      $region9: #{tpu_custom_call.1} parent=5 // pred_check
        _
      $region10: #{tpu_custom_call.1} parent=5 // pred_check_branch
        %207 = sbr.rel (%p204) target = $region12
      $region11: #{tpu_custom_call.1} parent=5 // pred_region
        %s208 = ssub.s32 %s16, 1
        // Predicated region
        $region13: #{tpu_custom_call.1} parent=11 // pred_check
          %p209 = pneg %p63
        $region14: #{tpu_custom_call.1} parent=11 // pred_check_branch
          %211 = sbr.rel (%p209) target = $region16
        $region15: #{tpu_custom_call.1} parent=11 // pred_region
          _
        $region16: #{tpu_custom_call.1} parent=11 // pred_fallthru
          _
        // Predicated region
        $region17: #{tpu_custom_call.1} parent=11 // pred_check
          %p212 = pneg %p84
        $region18: #{tpu_custom_call.1} parent=11 // pred_check_branch
          %214 = sbr.rel (%p212) target = $region20
        $region19: #{tpu_custom_call.1} parent=11 // pred_region
          _
        $region20: #{tpu_custom_call.1} parent=11 // pred_fallthru
          _
        // Predicated region
        $region21: #{tpu_custom_call.1} parent=11 // pred_check
          %p215 = pneg %p105
        $region22: #{tpu_custom_call.1} parent=11 // pred_check_branch
          %217 = sbr.rel (%p215) target = $region24
        $region23: #{tpu_custom_call.1} parent=11 // pred_region
          _
        $region24: #{tpu_custom_call.1} parent=11 // pred_fallthru
          _
        // Predicated region
        $region25: #{tpu_custom_call.1} parent=11 // pred_check
          %p218 = pneg %p126
        $region26: #{tpu_custom_call.1} parent=11 // pred_check_branch
          %220 = sbr.rel (%p218) target = $region28
        $region27: #{tpu_custom_call.1} parent=11 // pred_region
          _
        $region28: #{tpu_custom_call.1} parent=11 // pred_fallthru
          _
        // Predicated region
        $region29: #{tpu_custom_call.1} parent=11 // pred_check
          %p221 = pneg %p147
        $region30: #{tpu_custom_call.1} parent=11 // pred_check_branch
          %223 = sbr.rel (%p221) target = $region32
        $region31: #{tpu_custom_call.1} parent=11 // pred_region
          _
        $region32: #{tpu_custom_call.1} parent=11 // pred_fallthru
          _
        // Predicated region
        $region33: #{tpu_custom_call.1} parent=11 // pred_check
          %p224 = pneg %p168
        $region34: #{tpu_custom_call.1} parent=11 // pred_check_branch
          %226 = sbr.rel (%p224) target = $region36
        $region35: #{tpu_custom_call.1} parent=11 // pred_region
          _
        $region36: #{tpu_custom_call.1} parent=11 // pred_fallthru
          _
      $region12: #{tpu_custom_call.1} parent=5 // pred_fallthru
        _
      %p227 = scmp.lt.s32.totalorder %s16, 2
      // Predicated region
      $region37: #{tpu_custom_call.1} parent=5 // pred_check
        %p228 = pneg %p227
      $region38: #{tpu_custom_call.1} parent=5 // pred_check_branch
        %230 = sbr.rel (%p228) target = $region40
      $region39: #{tpu_custom_call.1} parent=5 // pred_region
        // Predicated region
        $region41: #{tpu_custom_call.1} parent=39 // pred_check
          %p231 = pneg %p36
        $region42: #{tpu_custom_call.1} parent=39 // pred_check_branch
          %233 = sbr.rel (%p231) target = $region44
        $region43: #{tpu_custom_call.1} parent=39 // pred_region
          %s234 = smul.u32 4, %s16
          %p235 = scmp.lt.s32.totalorder %s234, 7
          %s236 = scalar_select %p235, %s234, 7
          %s237 = smul.addr %s236, 2
          %s238 = smul.addr %s237, 8
          %s239 = scalar_lea.vmem %s0, %s238
          %s240 = smul.u32 4, %s16
        $region44: #{tpu_custom_call.1} parent=39 // pred_fallthru
          _
      $region40: #{tpu_custom_call.1} parent=5 // pred_fallthru
        _
      %p241 = scmp.le.s32.totalorder 1, %s16
      %p242 = scmp.lt.s32.totalorder %s16, 3
      %p243 = pnand %p241, %p242
      %p244 = pneg %p243
      // Predicated region
      $region45: #{tpu_custom_call.1} parent=5 // pred_check
        _
      $region46: #{tpu_custom_call.1} parent=5 // pred_check_branch
        %246 = sbr.rel (%p243) target = $region48
      $region47: #{tpu_custom_call.1} parent=5 // pred_region
        %s247 = ssub.s32 %s16, 1
        %s248 = smul.u32 4, %s21
        %p249 = scmp.lt.s32.totalorder %s248, 7
        %s250 = scalar_select %p249, %s248, 7
        %s251 = smul.addr %s250, 2
        %s252 = smul.addr %s251, 8
        %s253 = scalar_lea.vmem %s0, %s252
        %p254 = pneg %p42
        %p255 = pneg %p39
        %p256 = pneg %p63
        %p257 = pneg %p60
        %p258 = pneg %p84
        %p259 = pneg %p81
        %p260 = pneg %p105
        %p261 = pneg %p102
        %p262 = pneg %p126
        %p263 = pneg %p123
        %p264 = pneg %p147
        %p265 = pneg %p144
        %p266 = pneg %p168
        %p267 = pneg %p165
        %p268 = pneg %p194
        %p269 = pneg %p191
        %s270 = sand.u32 %s181, 1
        %s271 = scalar_lea.sflag [#allocation3], %s270
        %s272 = sand.u32 %s181, 1
        %s273 = smul.addr %s272, 64
        %s274 = scalar_lea.vmem [#allocation2], %s273
        %s275 = smul.u32 4, %s21
        %p276 = scmp.lt.s32.totalorder %s275, 7
        %s277 = scalar_select %p276, %s275, 7
        %s278 = smul.addr %s277, 2
        %s279 = smul.addr %s278, 8
        %s280 = scalar_lea.vmem %s0, %s279
        %s281 = smul.u32 4, %s21
        %s282 = smul.u32 4, %s21
        %v283 = vld [vmem:[%s280] sm:$0xff]
        %v284 = vld [vmem:[%s280 + $0x8] sm:$0xff]
        %v285 = vld [vmem:[%s280 + $0x10] sm:$0xff]
        %v286 = vld [vmem:[%s280 + $0x18] sm:$0xff]
        %v287 = vld [vmem:[%s280 + $0x20] sm:$0xff]
        %v288 = vld [vmem:[%s280 + $0x28] sm:$0xff]
        %v289 = vld [vmem:[%s280 + $0x30] sm:$0xff]
        %v290 = vld [vmem:[%s280 + $0x38] sm:$0xff]
        %v291 = vld [vmem:[%s4] sm:$0xff]
        %v292 = vld [vmem:[%s4 + $0x8] sm:$0xff]
        %v293 = vld [vmem:[%s4 + $0x10] sm:$0xff]
        %v294 = vld [vmem:[%s4 + $0x18] sm:$0xff]
        %v295 = vld [vmem:[%s4 + $0x20] sm:$0xff]
        %v296 = vld [vmem:[%s4 + $0x28] sm:$0xff]
        %v297 = vld [vmem:[%s4 + $0x30] sm:$0xff]
        %v298 = vld [vmem:[%s4 + $0x38] sm:$0xff]
        %v299 = vld [vmem:[%s4 + $0x40] sm:$0xff]
        %v300 = vld [vmem:[%s4 + $0x48] sm:$0xff]
        %v301 = vld [vmem:[%s4 + $0x50] sm:$0xff]
        %v302 = vld [vmem:[%s4 + $0x58] sm:$0xff]
        %v303 = vld [vmem:[%s4 + $0x60] sm:$0xff]
        %v304 = vld [vmem:[%s4 + $0x68] sm:$0xff]
        %v305 = vld [vmem:[%s4 + $0x70] sm:$0xff]
        %v306 = vld [vmem:[%s4 + $0x78] sm:$0xff]
        %v307 = vld [vmem:[%s4 + $0x80] sm:$0xff]
        %v308 = vld [vmem:[%s4 + $0x88] sm:$0xff]
        %v309 = vld [vmem:[%s4 + $0x90] sm:$0xff]
        %v310 = vld [vmem:[%s4 + $0x98] sm:$0xff]
        %v311 = vld [vmem:[%s4 + $0xa0] sm:$0xff]
        %v312 = vld [vmem:[%s4 + $0xa8] sm:$0xff]
        %v313 = vld [vmem:[%s4 + $0xb0] sm:$0xff]
        %v314 = vld [vmem:[%s4 + $0xb8] sm:$0xff]
        %v315 = vld [vmem:[%s4 + $0xc0] sm:$0xff]
        %v316 = vld [vmem:[%s4 + $0xc8] sm:$0xff]
        %v317 = vld [vmem:[%s4 + $0xd0] sm:$0xff]
        %v318 = vld [vmem:[%s4 + $0xd8] sm:$0xff]
        %v319 = vld [vmem:[%s4 + $0xe0] sm:$0xff]
        %v320 = vld [vmem:[%s4 + $0xe8] sm:$0xff]
        %v321 = vld [vmem:[%s4 + $0xf0] sm:$0xff]
        %v322 = vld [vmem:[%s4 + $0xf8] sm:$0xff]
        %323 = vmatprep.subr.mxu0 0.0
        %324 = vmatpush1.msra.mxu0 %v306
        %325 = vmatprep.subr.mxu0 0.0
        %326 = vmatpush1.msra.mxu0 %v305
        %327 = vmatprep.subr.mxu0 0.0
        %328 = vmatpush1.msra.mxu0 %v304
        %329 = vmatprep.subr.mxu0 0.0
        %330 = vmatpush1.msra.mxu0 %v303
        %331 = vmatprep.subr.mxu0 0.0
        %332 = vmatpush1.msra.mxu0 %v302
        %333 = vmatprep.subr.mxu0 0.0
        %334 = vmatpush1.msra.mxu0 %v301
        %335 = vmatprep.subr.mxu0 0.0
        %336 = vmatpush1.msra.mxu0 %v300
        %337 = vmatprep.subr.mxu0 0.0
        %338 = vmatpush1.msra.mxu0 %v299
        %339 = vmatprep.subr.mxu0 0.0
        %340 = vmatpush1.msra.mxu0 %v298
        %341 = vmatprep.subr.mxu0 0.0
        %342 = vmatpush1.msra.mxu0 %v297
        %343 = vmatprep.subr.mxu0 0.0
        %344 = vmatpush1.msra.mxu0 %v296
        %345 = vmatprep.subr.mxu0 0.0
        %346 = vmatpush1.msra.mxu0 %v295
        %347 = vmatprep.subr.mxu0 0.0
        %348 = vmatpush1.msra.mxu0 %v294
        %349 = vmatprep.subr.mxu0 0.0
        %350 = vmatpush1.msra.mxu0 %v293
        %351 = vmatprep.subr.mxu0 0.0
        %352 = vmatpush1.msra.mxu0 %v292
        %353 = vmatprep.subr.mxu0 0.0
        %354 = vmatpush1.msra.mxu0 %v291
        %355 = vmatprep.subr.mxu0 0.0
        %356 = vmatpush2.msra.mxu0 %v322
        %357 = vmatprep.subr.mxu0 0.0
        %358 = vmatpush2.msra.mxu0 %v321
        %359 = vmatprep.subr.mxu0 0.0
        %360 = vmatpush2.msra.mxu0 %v320
        %361 = vmatprep.subr.mxu0 0.0
        %362 = vmatpush2.msra.mxu0 %v319
        %363 = vmatprep.subr.mxu0 0.0
        %364 = vmatpush2.msra.mxu0 %v318
        %365 = vmatprep.subr.mxu0 0.0
        %366 = vmatpush2.msra.mxu0 %v317
        %367 = vmatprep.subr.mxu0 0.0
        %368 = vmatpush2.msra.mxu0 %v316
        %369 = vmatprep.subr.mxu0 0.0
        %370 = vmatpush2.msra.mxu0 %v315
        %371 = vmatprep.subr.mxu0 0.0
        %372 = vmatpush2.msra.mxu0 %v314
        %373 = vmatprep.subr.mxu0 0.0
        %374 = vmatpush2.msra.mxu0 %v313
        %375 = vmatprep.subr.mxu0 0.0
        %376 = vmatpush2.msra.mxu0 %v312
        %377 = vmatprep.subr.mxu0 0.0
        %378 = vmatpush2.msra.mxu0 %v311
        %379 = vmatprep.subr.mxu0 0.0
        %380 = vmatpush2.msra.mxu0 %v310
        %381 = vmatprep.subr.mxu0 0.0
        %382 = vmatpush2.msra.mxu0 %v309
        %383 = vmatprep.subr.mxu0 0.0
        %384 = vmatpush2.msra.mxu0 %v308
        %385 = vmatprep.subr.mxu0 0.0
        %386 = vmatpush2.msra.mxu0 %v307
        %387 = vmatprep.mubr.f32.mxu0 %v284
        %388 = vmatmul.mubr.f32.gmra.mxu0 %v283
        %v389 = vpop.f32.mrf.mxu0
        %v390 = vadd.f32 0.0, %v389
        %v391 = vpop.f32.mrf.mxu0
        %392 = vmatprep.mubr.f32.mxu0 %v286
        %393 = vmatmul.mubr.f32.gmra.mxu0 %v285
        %v394 = vpop.f32.mrf.mxu0
        %v395 = vadd.f32 0.0, %v394
        %v396 = vpop.f32.mrf.mxu0
        %397 = vmatprep.mubr.f32.mxu0 %v288
        %398 = vmatmul.mubr.f32.gmra.mxu0 %v287
        %v399 = vpop.f32.mrf.mxu0
        %v400 = vadd.f32 0.0, %v399
        %v401 = vpop.f32.mrf.mxu0
        %402 = vmatprep.mubr.f32.mxu0 %v290
        %403 = vmatmul.mubr.f32.gmra.mxu0 %v289
        %v404 = vpop.f32.mrf.mxu0
        %v405 = vadd.f32 0.0, %v404
        %v406 = vpop.f32.mrf.mxu0
        %407 = vdwg.mxu0
        %v408 = vld [vmem:[%s1] sm:$0xff]
        %v409 = vld [vmem:[%s3] sm:$0xff]
        %vm410 = vcmask 261120
        %v412 = vsel %vm410, %v408, 0
        %414 = vmatprep.subr.mxu0 0.0
        %415 = vmatpush1.msra.mxu0 0.0
        %416 = vmatprep.subr.mxu0 0.0
        %417 = vmatpush1.msra.mxu0 0.0
        %418 = vmatprep.subr.mxu0 0.0
        %419 = vmatpush1.msra.mxu0 0.0
        %420 = vmatprep.subr.mxu0 0.0
        %421 = vmatpush1.msra.mxu0 0.0
        %422 = vmatprep.subr.mxu0 0.0
        %423 = vmatpush1.msra.mxu0 0.0
        %424 = vmatprep.subr.mxu0 0.0
        %425 = vmatpush1.msra.mxu0 0.0
        %426 = vmatprep.subr.mxu0 0.0
        %427 = vmatpush1.msra.mxu0 0.0
        %428 = vmatprep.subr.mxu0 0.0
        %429 = vmatpush1.msra.mxu0 0.0
        %430 = vmatprep.subr.mxu0 0.0
        %431 = vmatpush1.msra.mxu0 0.0
        %432 = vmatprep.subr.mxu0 0.0
        %433 = vmatpush1.msra.mxu0 0.0
        %434 = vmatprep.subr.mxu0 0.0
        %435 = vmatpush1.msra.mxu0 0.0
        %436 = vmatprep.subr.mxu0 0.0
        %437 = vmatpush1.msra.mxu0 0.0
        %438 = vmatprep.subr.mxu0 0.0
        %439 = vmatpush1.msra.mxu0 %v405
        %440 = vmatprep.subr.mxu0 0.0
        %441 = vmatpush1.msra.mxu0 %v400
        %442 = vmatprep.subr.mxu0 0.0
        %443 = vmatpush1.msra.mxu0 %v395
        %444 = vmatprep.subr.mxu0 0.0
        %445 = vmatpush1.msra.mxu0 %v390
        %446 = vmatprep.subr.mxu0 0.0
        %447 = vmatpush2.msra.mxu0 0.0
        %448 = vmatprep.subr.mxu0 0.0
        %449 = vmatpush2.msra.mxu0 0.0
        %450 = vmatprep.subr.mxu0 0.0
        %451 = vmatpush2.msra.mxu0 0.0
        %452 = vmatprep.subr.mxu0 0.0
        %453 = vmatpush2.msra.mxu0 0.0
        %454 = vmatprep.subr.mxu0 0.0
        %455 = vmatpush2.msra.mxu0 0.0
        %456 = vmatprep.subr.mxu0 0.0
        %457 = vmatpush2.msra.mxu0 0.0
        %458 = vmatprep.subr.mxu0 0.0
        %459 = vmatpush2.msra.mxu0 0.0
        %460 = vmatprep.subr.mxu0 0.0
        %461 = vmatpush2.msra.mxu0 0.0
        %462 = vmatprep.subr.mxu0 0.0
        %463 = vmatpush2.msra.mxu0 0.0
        %464 = vmatprep.subr.mxu0 0.0
        %465 = vmatpush2.msra.mxu0 0.0
        %466 = vmatprep.subr.mxu0 0.0
        %467 = vmatpush2.msra.mxu0 0.0
        %468 = vmatprep.subr.mxu0 0.0
        %469 = vmatpush2.msra.mxu0 0.0
        %470 = vmatprep.subr.mxu0 0.0
        %471 = vmatpush2.msra.mxu0 0.0
        %472 = vmatprep.subr.mxu0 0.0
        %473 = vmatpush2.msra.mxu0 0.0
        %474 = vmatprep.subr.mxu0 0.0
        %475 = vmatpush2.msra.mxu0 0.0
        %476 = vmatprep.subr.mxu0 0.0
        %477 = vmatpush2.msra.mxu0 0.0
        %478 = vmatprep.mubr.f32.mxu0 0.0
        %479 = vmatmul.mubr.f32.gmra.mxu0 %v412
        %v480 = vpop.f32.mrf.mxu0
        %v481 = vadd.f32 %v409, %v480
        %v482 = vpop.f32.mrf.mxu0
        %483 = vdwg.mxu0
        %v484 = vmax.f32 %v481, 0.0
        %v485 = vld [vmem:[%s2] sm:$0xff]
        %v486 = vld [vmem:[%s2 + $0x8] sm:$0xff]
        %v487 = vld [vmem:[%s2 + $0x10] sm:$0xff]
        %v488 = vld [vmem:[%s2 + $0x18] sm:$0xff]
        %v489 = vld [vmem:[%s2 + $0x20] sm:$0xff]
        %v490 = vld [vmem:[%s2 + $0x28] sm:$0xff]
        %v491 = vld [vmem:[%s2 + $0x30] sm:$0xff]
        %v492 = vld [vmem:[%s2 + $0x38] sm:$0xff]
        %vm493 = vcmask 64512
        %v495 = vsel %vm493, %v485, 0
        %v498 = vsel %vm493, %v486, 0
        %v501 = vsel %vm493, %v487, 0
        %v504 = vsel %vm493, %v488, 0
        %v507 = vsel %vm493, %v489, 0
        %v510 = vsel %vm493, %v490, 0
        %v513 = vsel %vm493, %v491, 0
        %v516 = vsel %vm493, %v492, 0
        %518 = vmatprep.subr.mxu0 0.0
        %519 = vmatpush1.msra.mxu0 0.0
        %520 = vmatprep.subr.mxu0 0.0
        %521 = vmatpush1.msra.mxu0 0.0
        %522 = vmatprep.subr.mxu0 0.0
        %523 = vmatpush1.msra.mxu0 0.0
        %524 = vmatprep.subr.mxu0 0.0
        %525 = vmatpush1.msra.mxu0 0.0
        %526 = vmatprep.subr.mxu0 0.0
        %527 = vmatpush1.msra.mxu0 0.0
        %528 = vmatprep.subr.mxu0 0.0
        %529 = vmatpush1.msra.mxu0 0.0
        %530 = vmatprep.subr.mxu0 0.0
        %531 = vmatpush1.msra.mxu0 0.0
        %532 = vmatprep.subr.mxu0 0.0
        %533 = vmatpush1.msra.mxu0 0.0
        %534 = vmatprep.subr.mxu0 0.0
        %535 = vmatpush1.msra.mxu0 0.0
        %536 = vmatprep.subr.mxu0 0.0
        %537 = vmatpush1.msra.mxu0 0.0
        %538 = vmatprep.subr.mxu0 0.0
        %539 = vmatpush1.msra.mxu0 0.0
        %540 = vmatprep.subr.mxu0 0.0
        %541 = vmatpush1.msra.mxu0 0.0
        %542 = vmatprep.subr.mxu0 0.0
        %543 = vmatpush1.msra.mxu0 0.0
        %544 = vmatprep.subr.mxu0 0.0
        %545 = vmatpush1.msra.mxu0 0.0
        %546 = vmatprep.subr.mxu0 0.0
        %547 = vmatpush1.msra.mxu0 0.0
        %548 = vmatprep.subr.mxu0 0.0
        %549 = vmatpush1.msra.mxu0 %v484
        %550 = vmatprep.subr.mxu0 0.0
        %551 = vmatpush2.msra.mxu0 0.0
        %552 = vmatprep.subr.mxu0 0.0
        %553 = vmatpush2.msra.mxu0 0.0
        %554 = vmatprep.subr.mxu0 0.0
        %555 = vmatpush2.msra.mxu0 0.0
        %556 = vmatprep.subr.mxu0 0.0
        %557 = vmatpush2.msra.mxu0 0.0
        %558 = vmatprep.subr.mxu0 0.0
        %559 = vmatpush2.msra.mxu0 0.0
        %560 = vmatprep.subr.mxu0 0.0
        %561 = vmatpush2.msra.mxu0 0.0
        %562 = vmatprep.subr.mxu0 0.0
        %563 = vmatpush2.msra.mxu0 0.0
        %564 = vmatprep.subr.mxu0 0.0
        %565 = vmatpush2.msra.mxu0 0.0
        %566 = vmatprep.subr.mxu0 0.0
        %567 = vmatpush2.msra.mxu0 0.0
        %568 = vmatprep.subr.mxu0 0.0
        %569 = vmatpush2.msra.mxu0 0.0
        %570 = vmatprep.subr.mxu0 0.0
        %571 = vmatpush2.msra.mxu0 0.0
        %572 = vmatprep.subr.mxu0 0.0
        %573 = vmatpush2.msra.mxu0 0.0
        %574 = vmatprep.subr.mxu0 0.0
        %575 = vmatpush2.msra.mxu0 0.0
        %576 = vmatprep.subr.mxu0 0.0
        %577 = vmatpush2.msra.mxu0 0.0
        %578 = vmatprep.subr.mxu0 0.0
        %579 = vmatpush2.msra.mxu0 0.0
        %580 = vmatprep.subr.mxu0 0.0
        %581 = vmatpush2.msra.mxu0 0.0
        %582 = vmatprep.mubr.f32.mxu0 0.0
        %583 = vmatmul.mubr.f32.gmra.mxu0 %v495
        %v584 = vpop.f32.mrf.mxu0
        %v585 = vadd.f32 0.0, %v584
        %v586 = vpop.f32.mrf.mxu0
        %587 = vmatprep.mubr.f32.mxu0 0.0
        %588 = vmatmul.mubr.f32.gmra.mxu0 %v498
        %v589 = vpop.f32.mrf.mxu0
        %v590 = vadd.f32 0.0, %v589
        %v591 = vpop.f32.mrf.mxu0
        %592 = vmatprep.mubr.f32.mxu0 0.0
        %593 = vmatmul.mubr.f32.gmra.mxu0 %v501
        %v594 = vpop.f32.mrf.mxu0
        %v595 = vadd.f32 0.0, %v594
        %v596 = vpop.f32.mrf.mxu0
        %597 = vmatprep.mubr.f32.mxu0 0.0
        %598 = vmatmul.mubr.f32.gmra.mxu0 %v504
        %v599 = vpop.f32.mrf.mxu0
        %v600 = vadd.f32 0.0, %v599
        %v601 = vpop.f32.mrf.mxu0
        %602 = vmatprep.mubr.f32.mxu0 0.0
        %603 = vmatmul.mubr.f32.gmra.mxu0 %v507
        %v604 = vpop.f32.mrf.mxu0
        %v605 = vadd.f32 0.0, %v604
        %v606 = vpop.f32.mrf.mxu0
        %607 = vmatprep.mubr.f32.mxu0 0.0
        %608 = vmatmul.mubr.f32.gmra.mxu0 %v510
        %v609 = vpop.f32.mrf.mxu0
        %v610 = vadd.f32 0.0, %v609
        %v611 = vpop.f32.mrf.mxu0
        %612 = vmatprep.mubr.f32.mxu0 0.0
        %613 = vmatmul.mubr.f32.gmra.mxu0 %v513
        %v614 = vpop.f32.mrf.mxu0
        %v615 = vadd.f32 0.0, %v614
        %v616 = vpop.f32.mrf.mxu0
        %617 = vmatprep.mubr.f32.mxu0 0.0
        %618 = vmatmul.mubr.f32.gmra.mxu0 %v516
        %v619 = vpop.f32.mrf.mxu0
        %v620 = vadd.f32 0.0, %v619
        %v621 = vpop.f32.mrf.mxu0
        %622 = vdwg.mxu0
        %v623 = vxor.u32 %v585, 2147483648
        %v624 = vxor.u32 %v590, 2147483648
        %v625 = vxor.u32 %v595, 2147483648
        %v626 = vxor.u32 %v600, 2147483648
        %v627 = vxor.u32 %v605, 2147483648
        %v628 = vxor.u32 %v610, 2147483648
        %v629 = vxor.u32 %v615, 2147483648
        %v630 = vxor.u32 %v620, 2147483648
        %v631 = vmul.f32 %v623, 1.442695
        %v632 = vpow.pop %v631
        %v633 = vmul.f32 %v624, 1.442695
        %v634 = vpow.pop %v633
        %v635 = vmul.f32 %v625, 1.442695
        %v636 = vpow.pop %v635
        %v637 = vmul.f32 %v626, 1.442695
        %v638 = vpow.pop %v637
        %v639 = vmul.f32 %v627, 1.442695
        %v640 = vpow.pop %v639
        %v641 = vmul.f32 %v628, 1.442695
        %v642 = vpow.pop %v641
        %v643 = vmul.f32 %v629, 1.442695
        %v644 = vpow.pop %v643
        %v645 = vmul.f32 %v630, 1.442695
        %v646 = vpow.pop %v645
        %v647 = vadd.f32 %v632, 1.0
        %v648 = vadd.f32 %v634, 1.0
        %v649 = vadd.f32 %v636, 1.0
        %v650 = vadd.f32 %v638, 1.0
        %v651 = vadd.f32 %v640, 1.0
        %v652 = vadd.f32 %v642, 1.0
        %v653 = vadd.f32 %v644, 1.0
        %v654 = vadd.f32 %v646, 1.0
        %v655 = vrcp.pop %v647
        %v656 = vmul.f32 1.0, %v655
        %v657 = vrcp.pop %v648
        %v658 = vmul.f32 1.0, %v657
        %v659 = vrcp.pop %v649
        %v660 = vmul.f32 1.0, %v659
        %v661 = vrcp.pop %v650
        %v662 = vmul.f32 1.0, %v661
        %v663 = vrcp.pop %v651
        %v664 = vmul.f32 1.0, %v663
        %v665 = vrcp.pop %v652
        %v666 = vmul.f32 1.0, %v665
        %v667 = vrcp.pop %v653
        %v668 = vmul.f32 1.0, %v667
        %v669 = vrcp.pop %v654
        %v670 = vmul.f32 1.0, %v669
        %v671 = vld [vmem:[%s5] sm:$0xff]
        %v672 = vld [vmem:[%s5 + $0x8] sm:$0xff]
        %v673 = vld [vmem:[%s5 + $0x10] sm:$0xff]
        %v674 = vld [vmem:[%s5 + $0x18] sm:$0xff]
        %v675 = vld [vmem:[%s5 + $0x20] sm:$0xff]
        %v676 = vld [vmem:[%s5 + $0x28] sm:$0xff]
        %v677 = vld [vmem:[%s5 + $0x30] sm:$0xff]
        %v678 = vld [vmem:[%s5 + $0x38] sm:$0xff]
        %v680 = vsel %vm410, %v656, 0
        %v683 = vsel %vm410, %v658, 0
        %v686 = vsel %vm410, %v660, 0
        %v689 = vsel %vm410, %v662, 0
        %691 = vmatprep.subr.mxu0 0.0
        %692 = vmatpush1.msra.mxu0 0.0
        %693 = vmatprep.subr.mxu0 0.0
        %694 = vmatpush1.msra.mxu0 0.0
        %695 = vmatprep.subr.mxu0 0.0
        %696 = vmatpush1.msra.mxu0 0.0
        %697 = vmatprep.subr.mxu0 0.0
        %698 = vmatpush1.msra.mxu0 0.0
        %699 = vmatprep.subr.mxu0 0.0
        %700 = vmatpush1.msra.mxu0 0.0
        %701 = vmatprep.subr.mxu0 0.0
        %702 = vmatpush1.msra.mxu0 0.0
        %703 = vmatprep.subr.mxu0 0.0
        %704 = vmatpush1.msra.mxu0 0.0
        %705 = vmatprep.subr.mxu0 0.0
        %706 = vmatpush1.msra.mxu0 0.0
        %707 = vmatprep.subr.mxu0 0.0
        %708 = vmatpush1.msra.mxu0 0.0
        %709 = vmatprep.subr.mxu0 0.0
        %710 = vmatpush1.msra.mxu0 0.0
        %711 = vmatprep.subr.mxu0 0.0
        %712 = vmatpush1.msra.mxu0 0.0
        %713 = vmatprep.subr.mxu0 0.0
        %714 = vmatpush1.msra.mxu0 0.0
        %715 = vmatprep.subr.mxu0 %v678
        %716 = vmatpush1.msra.mxu0 %v677
        %717 = vmatprep.subr.mxu0 %v676
        %718 = vmatpush1.msra.mxu0 %v675
        %719 = vmatprep.subr.mxu0 %v674
        %720 = vmatpush1.msra.mxu0 %v673
        %721 = vmatprep.subr.mxu0 %v672
        %722 = vmatpush1.msra.mxu0 %v671
        %723 = vmatprep.subr.mxu0 0.0
        %724 = vmatpush2.msra.mxu0 0.0
        %725 = vmatprep.subr.mxu0 0.0
        %726 = vmatpush2.msra.mxu0 0.0
        %727 = vmatprep.subr.mxu0 0.0
        %728 = vmatpush2.msra.mxu0 0.0
        %729 = vmatprep.subr.mxu0 0.0
        %730 = vmatpush2.msra.mxu0 0.0
        %731 = vmatprep.subr.mxu0 0.0
        %732 = vmatpush2.msra.mxu0 0.0
        %733 = vmatprep.subr.mxu0 0.0
        %734 = vmatpush2.msra.mxu0 0.0
        %735 = vmatprep.subr.mxu0 0.0
        %736 = vmatpush2.msra.mxu0 0.0
        %737 = vmatprep.subr.mxu0 0.0
        %738 = vmatpush2.msra.mxu0 0.0
        %739 = vmatprep.subr.mxu0 0.0
        %740 = vmatpush2.msra.mxu0 0.0
        %741 = vmatprep.subr.mxu0 0.0
        %742 = vmatpush2.msra.mxu0 0.0
        %743 = vmatprep.subr.mxu0 0.0
        %744 = vmatpush2.msra.mxu0 0.0
        %745 = vmatprep.subr.mxu0 0.0
        %746 = vmatpush2.msra.mxu0 0.0
        %747 = vmatprep.subr.mxu0 0.0
        %748 = vmatpush2.msra.mxu0 0.0
        %749 = vmatprep.subr.mxu0 0.0
        %750 = vmatpush2.msra.mxu0 0.0
        %751 = vmatprep.subr.mxu0 0.0
        %752 = vmatpush2.msra.mxu0 0.0
        %753 = vmatprep.subr.mxu0 0.0
        %754 = vmatpush2.msra.mxu0 0.0
        %755 = vmatprep.mubr.f32.mxu0 0.0
        %756 = vmatmul.mubr.f32.gmra.mxu0 %v680
        %v757 = vpop.f32.mrf.mxu0
        %v758 = vadd.f32 0.0, %v757
        %v759 = vpop.f32.mrf.mxu0
        %v760 = vadd.f32 0.0, %v759
        %761 = vmatprep.mubr.f32.mxu0 0.0
        %762 = vmatmul.mubr.f32.gmra.mxu0 %v683
        %v763 = vpop.f32.mrf.mxu0
        %v764 = vadd.f32 0.0, %v763
        %v765 = vpop.f32.mrf.mxu0
        %v766 = vadd.f32 0.0, %v765
        %767 = vmatprep.mubr.f32.mxu0 0.0
        %768 = vmatmul.mubr.f32.gmra.mxu0 %v686
        %v769 = vpop.f32.mrf.mxu0
        %v770 = vadd.f32 0.0, %v769
        %v771 = vpop.f32.mrf.mxu0
        %v772 = vadd.f32 0.0, %v771
        %773 = vmatprep.mubr.f32.mxu0 0.0
        %774 = vmatmul.mubr.f32.gmra.mxu0 %v689
        %v775 = vpop.f32.mrf.mxu0
        %v776 = vadd.f32 0.0, %v775
        %v777 = vpop.f32.mrf.mxu0
        %v778 = vadd.f32 0.0, %v777
        %779 = vdwg.mxu0
        %v780 = vld [vmem:[%s6] sm:$0xff]
        %v781 = vld [vmem:[%s6 + $0x8] sm:$0xff]
        %v782 = vld [vmem:[%s6 + $0x10] sm:$0xff]
        %v783 = vld [vmem:[%s6 + $0x18] sm:$0xff]
        %v784 = vld [vmem:[%s6 + $0x20] sm:$0xff]
        %v785 = vld [vmem:[%s6 + $0x28] sm:$0xff]
        %v786 = vld [vmem:[%s6 + $0x30] sm:$0xff]
        %v787 = vld [vmem:[%s6 + $0x38] sm:$0xff]
        %v789 = vsel %vm410, %v664, 0
        %v792 = vsel %vm410, %v666, 0
        %v795 = vsel %vm410, %v668, 0
        %v798 = vsel %vm410, %v670, 0
        %800 = vmatprep.subr.mxu0 0.0
        %801 = vmatpush1.msra.mxu0 0.0
        %802 = vmatprep.subr.mxu0 0.0
        %803 = vmatpush1.msra.mxu0 0.0
        %804 = vmatprep.subr.mxu0 0.0
        %805 = vmatpush1.msra.mxu0 0.0
        %806 = vmatprep.subr.mxu0 0.0
        %807 = vmatpush1.msra.mxu0 0.0
        %808 = vmatprep.subr.mxu0 0.0
        %809 = vmatpush1.msra.mxu0 0.0
        %810 = vmatprep.subr.mxu0 0.0
        %811 = vmatpush1.msra.mxu0 0.0
        %812 = vmatprep.subr.mxu0 0.0
        %813 = vmatpush1.msra.mxu0 0.0
        %814 = vmatprep.subr.mxu0 0.0
        %815 = vmatpush1.msra.mxu0 0.0
        %816 = vmatprep.subr.mxu0 0.0
        %817 = vmatpush1.msra.mxu0 0.0
        %818 = vmatprep.subr.mxu0 0.0
        %819 = vmatpush1.msra.mxu0 0.0
        %820 = vmatprep.subr.mxu0 0.0
        %821 = vmatpush1.msra.mxu0 0.0
        %822 = vmatprep.subr.mxu0 0.0
        %823 = vmatpush1.msra.mxu0 0.0
        %824 = vmatprep.subr.mxu0 %v787
        %825 = vmatpush1.msra.mxu0 %v786
        %826 = vmatprep.subr.mxu0 %v785
        %827 = vmatpush1.msra.mxu0 %v784
        %828 = vmatprep.subr.mxu0 %v783
        %829 = vmatpush1.msra.mxu0 %v782
        %830 = vmatprep.subr.mxu0 %v781
        %831 = vmatpush1.msra.mxu0 %v780
        %832 = vmatprep.subr.mxu0 0.0
        %833 = vmatpush2.msra.mxu0 0.0
        %834 = vmatprep.subr.mxu0 0.0
        %835 = vmatpush2.msra.mxu0 0.0
        %836 = vmatprep.subr.mxu0 0.0
        %837 = vmatpush2.msra.mxu0 0.0
        %838 = vmatprep.subr.mxu0 0.0
        %839 = vmatpush2.msra.mxu0 0.0
        %840 = vmatprep.subr.mxu0 0.0
        %841 = vmatpush2.msra.mxu0 0.0
        %842 = vmatprep.subr.mxu0 0.0
        %843 = vmatpush2.msra.mxu0 0.0
        %844 = vmatprep.subr.mxu0 0.0
        %845 = vmatpush2.msra.mxu0 0.0
        %846 = vmatprep.subr.mxu0 0.0
        %847 = vmatpush2.msra.mxu0 0.0
        %848 = vmatprep.subr.mxu0 0.0
        %849 = vmatpush2.msra.mxu0 0.0
        %850 = vmatprep.subr.mxu0 0.0
        %851 = vmatpush2.msra.mxu0 0.0
        %852 = vmatprep.subr.mxu0 0.0
        %853 = vmatpush2.msra.mxu0 0.0
        %854 = vmatprep.subr.mxu0 0.0
        %855 = vmatpush2.msra.mxu0 0.0
        %856 = vmatprep.subr.mxu0 0.0
        %857 = vmatpush2.msra.mxu0 0.0
        %858 = vmatprep.subr.mxu0 0.0
        %859 = vmatpush2.msra.mxu0 0.0
        %860 = vmatprep.subr.mxu0 0.0
        %861 = vmatpush2.msra.mxu0 0.0
        %862 = vmatprep.subr.mxu0 0.0
        %863 = vmatpush2.msra.mxu0 0.0
        %864 = vmatprep.mubr.f32.mxu0 0.0
        %865 = vmatmul.mubr.f32.gmra.mxu0 %v789
        %v866 = vpop.f32.mrf.mxu0
        %v867 = vadd.f32 0.0, %v866
        %v868 = vpop.f32.mrf.mxu0
        %v869 = vadd.f32 0.0, %v868
        %870 = vmatprep.mubr.f32.mxu0 0.0
        %871 = vmatmul.mubr.f32.gmra.mxu0 %v792
        %v872 = vpop.f32.mrf.mxu0
        %v873 = vadd.f32 0.0, %v872
        %v874 = vpop.f32.mrf.mxu0
        %v875 = vadd.f32 0.0, %v874
        %876 = vmatprep.mubr.f32.mxu0 0.0
        %877 = vmatmul.mubr.f32.gmra.mxu0 %v795
        %v878 = vpop.f32.mrf.mxu0
        %v879 = vadd.f32 0.0, %v878
        %v880 = vpop.f32.mrf.mxu0
        %v881 = vadd.f32 0.0, %v880
        %882 = vmatprep.mubr.f32.mxu0 0.0
        %883 = vmatmul.mubr.f32.gmra.mxu0 %v798
        %v884 = vpop.f32.mrf.mxu0
        %v885 = vadd.f32 0.0, %v884
        %v886 = vpop.f32.mrf.mxu0
        %v887 = vadd.f32 0.0, %v886
        %888 = vdwg.mxu0
        %v889 = vmul.f32 %v758, %v867
        %v890 = vmul.f32 %v760, %v869
        %v891 = vmul.f32 %v764, %v873
        %v892 = vmul.f32 %v766, %v875
        %v893 = vmul.f32 %v770, %v879
        %v894 = vmul.f32 %v772, %v881
        %v895 = vmul.f32 %v776, %v885
        %v896 = vmul.f32 %v778, %v887
        %v897 = vmul.f32 %v283, %v889
        %v898 = vmul.f32 %v284, %v890
        %v899 = vmul.f32 %v285, %v891
        %v900 = vmul.f32 %v286, %v892
        %v901 = vmul.f32 %v287, %v893
        %v902 = vmul.f32 %v288, %v894
        %v903 = vmul.f32 %v289, %v895
        %v904 = vmul.f32 %v290, %v896
        %905 = vst [vmem:[%s274] sm:$0xff] %v897
        %906 = vst [vmem:[%s274 + $0x8] sm:$0xff] %v898
        %907 = vst [vmem:[%s274 + $0x10] sm:$0xff] %v899
        %908 = vst [vmem:[%s274 + $0x18] sm:$0xff] %v900
        %909 = vst [vmem:[%s274 + $0x20] sm:$0xff] %v901
        %910 = vst [vmem:[%s274 + $0x28] sm:$0xff] %v902
        %911 = vst [vmem:[%s274 + $0x30] sm:$0xff] %v903
        %912 = vst [vmem:[%s274 + $0x38] sm:$0xff] %v904
        %s913 = sand.u32 %s181, 1
        %s914 = scalar_lea.sflag [#allocation3], %s913
        %s915 = sand.u32 %s181, 1
        %s916 = smul.addr %s915, 64
        %s917 = scalar_lea.vmem [#allocation2], %s916
        // Predicated region
        $region49: #{tpu_custom_call.1} parent=47 // pred_check
          %p918 = pneg %p191
        $region50: #{tpu_custom_call.1} parent=47 // pred_check_branch
          %920 = sbr.rel (%p918) target = $region52
        $region51: #{tpu_custom_call.1} parent=47 // pred_region
          %s921 = smul.u32 4, %s21
          %s923 = ssub.s32 1024, 1024
          %924 = vsyncadd %s914, %s923
          %s925 = smul.addr %s921, 2
          %s926 = smul.addr %s925, 128
          %s927 = scalar_lea.hbm %s7, %s926
          %s928 = sshll.u32 %s917, 4
          %s929 = int_to_ptr.vmem [resolvable:$true] %s928
          %934 = dma.vmem_to_hbm [thread:$0]  %s929, 1024, %s927, %s914, 256, 256, 16
        $region52: #{tpu_custom_call.1} parent=47 // pred_fallthru
          _
      $region48: #{tpu_custom_call.1} parent=5 // pred_fallthru
        _
      %p935 = scmp.le.s32.totalorder 2, %s16
      // Predicated region
      $region53: #{tpu_custom_call.1} parent=5 // pred_check
        %p936 = pneg %p935
      $region54: #{tpu_custom_call.1} parent=5 // pred_check_branch
        %938 = sbr.rel (%p936) target = $region56
      $region55: #{tpu_custom_call.1} parent=5 // pred_region
        %s939 = ssub.s32 %s16, 2
        // Predicated region
        $region57: #{tpu_custom_call.1} parent=55 // pred_check
          %p940 = pneg %p197
        $region58: #{tpu_custom_call.1} parent=55 // pred_check_branch
          %942 = sbr.rel (%p940) target = $region60
        $region59: #{tpu_custom_call.1} parent=55 // pred_region
          %s943 = sand.u32 %s182, 1
          %s944 = scalar_lea.sflag [#allocation3], %s943
          %s945 = sand.u32 %s182, 1
          %s946 = smul.addr %s945, 64
          %s947 = scalar_lea.vmem [#allocation2], %s946
          %948 = dma.done %s944, 1024
        $region60: #{tpu_custom_call.1} parent=55 // pred_fallthru
          _
      $region56: #{tpu_custom_call.1} parent=5 // pred_fallthru
        _
    $region6: #{tpu_custom_call.1} parent=1 // loop_footer
      %s20 = sadd.s32 1, %s16
    $region7: #{tpu_custom_call.1} parent=1 // loop_footer_branch
      %15 = sbr.rel target = $region3
    $region8: #{tpu_custom_call.1} parent=1 // loop_exit
      _
    %949 = vsyncpa [#allocation3], 1
    %s950 = scalar_lea.sflag [#allocation3], 1
    %951 = vsyncpa %s950, 1

</llo_original>
